<compile_context>
chip_gen: v7x
topology: tpu7x:2x2x1
jax: 0.10.0
libtpu: 0.0.40
codegen_flags: <defaults>
</compile_context>

<pallas_src>
import functools

import jax
import jax.numpy as jnp
from jax.experimental import pallas as pl
from jax.experimental.pallas import tpu as pltpu


def _attention_kernel(x_ref, wqkv_ref, wout_ref, bout_ref, out_ref, attn_ref=None,
                      *, heads, dim_head):
    """One (bt, N, D) batch-tile per grid step.

    x_ref:    (bt, N, D)          bf16 activations
    wqkv_ref: (D, 3*inner)        bf16 to_qkv weight (scale folded into q cols)
    wout_ref: (inner, D)          bf16 to_out[0] weight
    bout_ref: (1, D)              f32  to_out[0] bias
    out_ref:  (bt, N, D)          output (original x dtype)
    attn_ref: (bt, H, N, N) f32   optional attention probabilities
    """
    f32, bf16 = jnp.float32, jnp.bfloat16
    bt, n_tok, dim = x_ref.shape
    inner = heads * dim_head
    rows = bt * n_tok

    # --- fused QKV projection: one big lane-dense matmul, f32 accumulation.
    x2d = x_ref[...].reshape(rows, dim)                                  # (rows, D) bf16
    qkv = jnp.dot(x2d, wqkv_ref[...], preferred_element_type=f32)        # (rows, 3*inner) f32
    qkv = qkv.astype(bf16)                                               # MXU operands for attention core

    o_rows = []                                                          # per-batch (N, inner) bf16
    for b in range(bt):
        r0 = b * n_tok
        o_heads = []
        for h in range(heads):
            cq = h * dim_head
            ck = inner + h * dim_head
            cv = 2 * inner + h * dim_head
            qh = qkv[r0:r0 + n_tok, cq:cq + dim_head]                    # (N, d) bf16 (pre-scaled)
            kh = qkv[r0:r0 + n_tok, ck:ck + dim_head]
            vh = qkv[r0:r0 + n_tok, cv:cv + dim_head]

            # Scaled scores (scale already folded into w_q) + stable softmax.
            s = jnp.einsum("nd,md->nm", qh, kh, preferred_element_type=f32)   # (N, N) f32
            m = jnp.max(s, axis=-1, keepdims=True)
            e = jnp.exp(s - m)
            l = jnp.sum(e, axis=-1, keepdims=True)

            if attn_ref is not None:
                p = e / l                                    # exact softmax for the returned probs
                attn_ref[b, h] = p.astype(attn_ref.dtype)
                o_h = jnp.dot(p.astype(bf16), vh, preferred_element_type=f32)
            else:
                # Fast path: normalize AFTER the PV matmul (N*d vs N*N multiplies).
                o_h = jnp.dot(e.astype(bf16), vh, preferred_element_type=f32)
                o_h = o_h * pl.reciprocal(l, approx=True)
            o_heads.append(o_h.astype(bf16))
        o_rows.append(jnp.concatenate(o_heads, axis=-1))                 # 'h n d -> n (h d)'

    o2d = jnp.concatenate(o_rows, axis=0) if bt > 1 else o_rows[0]       # (rows, inner) bf16

    # --- output projection: one matmul with full contraction depth `inner`.
    out = jnp.dot(o2d, wout_ref[...], preferred_element_type=f32) + bout_ref[...]
    out_ref[...] = out.reshape(bt, n_tok, dim).astype(out_ref.dtype)


def _pick_batch_tile(B, N, max_rows=512):
    """Largest divisor of B whose packed row count bt*N stays <= max_rows.

    Only batches multiple elements per step when N is sublane-aligned so the
    per-batch row slices inside the kernel stay cheap.
    """
    if N % 8 != 0:
        return 1
    best = 1
    for bt in range(1, B + 1):
        if B % bt == 0 and bt * N <= max(max_rows, N):
            best = bt
    return best


def _vmem_limit_bytes(bt, N, D, heads, dim_head, out_itemsize, return_attn):
    """Rough per-step VMEM budget: double-buffered blocks + intermediates, 2x headroom."""
    inner = heads * dim_head
    rows = bt * N
    weights = (D * 3 * inner + inner * D) * 2 + D * 4                    # bf16 weights + f32 bias
    io = rows * D * 2 + rows * D * out_itemsize                          # x block + out block
    if return_attn:
        io += bt * heads * N * N * 4
    interm = (rows * 3 * inner * (4 + 2)                                 # qkv f32 + bf16 copy
              + 2 * heads * N * N * 4                                    # s / e per head
              + rows * inner * 2 + rows * D * 4)                         # o2d + out
    total = 2 * (weights + io) + 2 * interm
    # Clamp: at least 16 MiB, at most 48 MiB (headroom below v7x's 64 MiB VMEM).
    return int(min(max(total, 16 * 1024 * 1024), 48 * 1024 * 1024))


def attention_forward(x, w_qkv, w_out, b_out, *, heads, dim_head, return_attn=True):
    """Pallas forward matching Attention.forward (dropout=0.0 -> identity).

    x:      (B, N, D)
    w_qkv:  (D, 3*inner) row-major (y = x @ w_qkv), inner = heads*dim_head
    w_out:  (inner, D)
    b_out:  (1, D)
    """
    B, N, D = x.shape
    inner = heads * dim_head
    assert w_qkv.shape == (D, 3 * inner)
    assert w_out.shape == (inner, D)
    scale = dim_head ** -0.5

    # One-time wrapper-side prep (never per grid step):
    #   * fold the softmax scale into the q columns of w_qkv
    #     ((x @ (wq*scale)) @ k^T == scale * q @ k^T -> identical dots/attn)
    #   * bf16 MXU operands, lane-dense 2-D weight layouts.
    wqkv_scaled = jnp.asarray(w_qkv, jnp.float32).at[:, :inner].multiply(scale)
    x_bf = x.astype(jnp.bfloat16)
    wqkv_bf = wqkv_scaled.astype(jnp.bfloat16)                           # (D, 3*inner)
    wout_bf = jnp.asarray(w_out).astype(jnp.bfloat16)                    # (inner, D)
    bout_f = jnp.asarray(b_out, jnp.float32).reshape(1, D)

    bt = _pick_batch_tile(B, N)
    grid = (B // bt,)
    kernel = functools.partial(_attention_kernel, heads=heads, dim_head=dim_head)

    in_specs = [
        pl.BlockSpec((bt, N, D), lambda i: (i, 0, 0)),
        pl.BlockSpec((D, 3 * inner), lambda i: (0, 0)),
        pl.BlockSpec((inner, D), lambda i: (0, 0)),
        pl.BlockSpec((1, D), lambda i: (0, 0)),
    ]
    out_spec = pl.BlockSpec((bt, N, D), lambda i: (i, 0, 0))
    if return_attn:
        out_shape = (
            jax.ShapeDtypeStruct((B, N, D), x.dtype),
            jax.ShapeDtypeStruct((B, heads, N, N), jnp.float32),
        )
        out_specs = (out_spec,
                     pl.BlockSpec((bt, heads, N, N), lambda i: (i, 0, 0, 0)))
    else:
        out_shape = jax.ShapeDtypeStruct((B, N, D), x.dtype)
        out_specs = out_spec

    vmem_bytes = _vmem_limit_bytes(bt, N, D, heads, dim_head,
                                   jnp.dtype(x.dtype).itemsize, return_attn)

    result = pl.pallas_call(
        kernel,
        out_shape=out_shape,
        grid=grid,
        in_specs=in_specs,
        out_specs=out_specs,
        compiler_params=pltpu.CompilerParams(
            dimension_semantics=("parallel",),
            vmem_limit_bytes=vmem_bytes,
        ),
    )(x_bf, wqkv_bf, wout_bf, bout_f)

    if return_attn:
        out, attn = result
        return {"out": out, "attn": attn}
    return {"out": result, "attn": None}


def reference_forward(x, w_qkv, w_out, b_out, *, heads, dim_head,
                      match_kernel_precision=False):
    """Pure-JAX reference mirroring the PyTorch forward.

    match_kernel_precision=True applies the same bf16 operand casts / f32
    accumulation as the kernel; False is the exact f32 PyTorch-semantics
    reference.
    """
    B, N, D = x.shape
    inner = heads * dim_head
    scale = dim_head ** -0.5
    lo = jnp.bfloat16 if match_kernel_precision else jnp.float32
    f32 = jnp.float32

    qkv = jnp.einsum("bnd,de->bne", x.astype(lo), w_qkv.astype(lo),
                     preferred_element_type=f32)                          # (B, N, 3*inner)
    q, k, v = jnp.split(qkv, 3, axis=-1)

    def to_heads(t):                                                      # 'b n (h d) -> b h n d'
        return t.reshape(B, N, heads, dim_head).transpose(0, 2, 1, 3).astype(lo)

    q, k, v = map(to_heads, (q, k, v))
    dots = jnp.einsum("bhnd,bhmd->bhnm", q, k, preferred_element_type=f32) * scale
    attn = jax.nn.softmax(dots, axis=-1)                                  # f32
    out = jnp.einsum("bhnm,bhmd->bhnd", attn.astype(lo), v, preferred_element_type=f32)
    out = out.astype(lo).transpose(0, 2, 1, 3).reshape(B, N, inner)
    out = jnp.einsum("bni,id->bnd", out, w_out.astype(lo),
                     preferred_element_type=f32) + b_out.astype(f32)
    return {"out": out, "attn": attn}


if __name__ == "__main__":
    # Small shapes consistent with the module's forward.
    B, N, DIM = 2, 8, 32
    HEADS, DIM_HEAD = 4, 16
    INNER = HEADS * DIM_HEAD

    key = jax.random.PRNGKey(0)
    kx, kq, ko, kb = jax.random.split(key, 4)

    x = jax.random.normal(kx, (B, N, DIM), dtype=jnp.float32)
    w_qkv = jax.random.normal(kq, (DIM, 3 * INNER), dtype=jnp.float32) * (DIM ** -0.5)
    w_out = jax.random.normal(ko, (INNER, DIM), dtype=jnp.float32) * (INNER ** -0.5)
    b_out = jax.random.normal(kb, (1, DIM), dtype=jnp.float32) * 0.01

    # Full module semantics: returns both 'out' and 'attn'.
    res = attention_forward(x, w_qkv, w_out, b_out,
                            heads=HEADS, dim_head=DIM_HEAD, return_attn=True)
    jax.block_until_ready(res["out"])
    jax.block_until_ready(res["attn"])

    # Check vs. a precision-matched reference (same bf16 operands).
    ref_m = reference_forward(x, w_qkv, w_out, b_out, heads=HEADS,
                              dim_head=DIM_HEAD, match_kernel_precision=True)
    assert jnp.allclose(res["out"], ref_m["out"], atol=2e-2, rtol=2e-2)
    assert jnp.allclose(res["attn"], ref_m["attn"], atol=2e-2, rtol=2e-2)

    # Exact-softmax property of the returned probabilities.
    row_sums = jnp.sum(res["attn"], axis=-1)
    assert jnp.allclose(row_sums, jnp.ones_like(row_sums), atol=1e-3, rtol=1e-3)

    # Loose sanity check vs. the exact f32 (PyTorch-semantics) reference.
    ref_f = reference_forward(x, w_qkv, w_out, b_out, heads=HEADS, dim_head=DIM_HEAD)
    assert jnp.allclose(res["out"], ref_f["out"], atol=1e-1, rtol=1e-1)
    assert jnp.allclose(res["attn"], ref_f["attn"], atol=5e-2, rtol=5e-2)

    # Fast eval path: no (B, H, N, N) attention writeback, deferred normalization.
    res_fast = attention_forward(x, w_qkv, w_out, b_out,
                                 heads=HEADS, dim_head=DIM_HEAD, return_attn=False)
    jax.block_until_ready(res_fast["out"])
    assert res_fast["attn"] is None
    assert jnp.allclose(res_fast["out"], res["out"], atol=5e-2, rtol=5e-2)
    assert jnp.allclose(res_fast["out"], ref_m["out"], atol=5e-2, rtol=5e-2)

    print("KERNEL_OK")
</pallas_src>

<mosaic_0001>
module attributes {stable_mosaic.version = 11 : i64} {
  func.func @_attention_kernel(%arg0: i32, %arg1: memref<2x8x32xbf16, #tpu.memory_space<vmem>>, %arg2: memref<32x192xbf16, #tpu.memory_space<vmem>>, %arg3: memref<64x32xbf16, #tpu.memory_space<vmem>>, %arg4: memref<1x32xf32, #tpu.memory_space<vmem>>, %arg5: memref<2x8x32xf32, #tpu.memory_space<vmem>>, %arg6: memref<2x4x8x8xf32, #tpu.memory_space<vmem>>) attributes {dimension_semantics = [#tpu.dimension_semantics<parallel>], iteration_bounds = array<i64: 1>, scalar_prefetch = 0 : i64, scratch_operands = 0 : i64, tpu.core_type = #tpu.core_type<tc>, window_params = [{transform_indices = @transform_0, window_bounds = array<i64: 2, 8, 32>}, {pipeline_mode = #tpu.pipeline_mode<synchronous>, transform_indices = @transform_1, window_bounds = array<i64: 32, 192>}, {pipeline_mode = #tpu.pipeline_mode<synchronous>, transform_indices = @transform_2, window_bounds = array<i64: 64, 32>}, {pipeline_mode = #tpu.pipeline_mode<synchronous>, transform_indices = @transform_3, window_bounds = array<i64: 1, 32>}, {transform_indices = @transform_4, window_bounds = array<i64: 2, 8, 32>}, {transform_indices = @transform_5, window_bounds = array<i64: 2, 4, 8, 8>}]} {
    %c0 = arith.constant 0 : index
    %c0_0 = arith.constant 0 : index
    %c0_1 = arith.constant 0 : index
    %0 = vector.load %arg1[%c0, %c0_0, %c0_1] : memref<2x8x32xbf16, #tpu.memory_space<vmem>>, vector<2x8x32xbf16>
    %1 = vector.shape_cast %0 : vector<2x8x32xbf16> to vector<16x32xbf16>
    %c0_2 = arith.constant 0 : index
    %c0_3 = arith.constant 0 : index
    %2 = vector.load %arg2[%c0_2, %c0_3] : memref<32x192xbf16, #tpu.memory_space<vmem>>, vector<32x192xbf16>
    %cst = arith.constant dense<0.000000e+00> : vector<16x192xf32>
    %3 = tpu.matmul %1, %2, %cst {dimension_numbers = #tpu.dot_dimension_numbers<[1], [0], [0], [1], [0, 0, 1, 1], [], []>} : vector<16x32xbf16>, vector<32x192xbf16>, vector<16x192xf32> -> vector<16x192xf32>
    %4 = arith.truncf %3 : vector<16x192xf32> to vector<16x192xbf16>
    %5 = vector.extract_strided_slice %4 {offsets = [0, 0], sizes = [8, 16], strides = [1, 1]} : vector<16x192xbf16> to vector<8x16xbf16>
    %6 = vector.extract_strided_slice %4 {offsets = [0, 64], sizes = [8, 16], strides = [1, 1]} : vector<16x192xbf16> to vector<8x16xbf16>
    %7 = vector.extract_strided_slice %4 {offsets = [0, 128], sizes = [8, 16], strides = [1, 1]} : vector<16x192xbf16> to vector<8x16xbf16>
    "tpu.trace_start"() <{level = 10 : i32, message = "nd,md->nm"}> : () -> ()
    %cst_4 = arith.constant dense<0.000000e+00> : vector<8x8xf32>
    %8 = tpu.matmul %5, %6, %cst_4 {dimension_numbers = #tpu.dot_dimension_numbers<[1], [1], [0], [0], [0, 0, 1, 0], [], []>} : vector<8x16xbf16>, vector<8x16xbf16>, vector<8x8xf32> -> vector<8x8xf32>
    "tpu.trace_stop"() : () -> ()
    %cst_5 = arith.constant dense<0xFF800000> : vector<8xf32>
    %9 = vector.multi_reduction <maximumf>, %8, %cst_5 [1] : vector<8x8xf32> to vector<8xf32>
    %10 = vector.shape_cast %9 : vector<8xf32> to vector<8x1xf32>
    %11 = vector.broadcast %10 : vector<8x1xf32> to vector<8x8xf32>
    %12 = arith.subf %8, %11 : vector<8x8xf32>
    %13 = math.exp %12 : vector<8x8xf32>
    %cst_6 = arith.constant dense<0.000000e+00> : vector<8xf32>
    %14 = vector.multi_reduction <add>, %13, %cst_6 [1] : vector<8x8xf32> to vector<8xf32>
    %15 = vector.shape_cast %14 : vector<8xf32> to vector<8x1xf32>
    %16 = vector.broadcast %15 : vector<8x1xf32> to vector<8x8xf32>
    %17 = arith.divf %13, %16 : vector<8x8xf32>
    %c0_7 = arith.constant 0 : index
    %c0_8 = arith.constant 0 : index
    %c0_9 = arith.constant 0 : index
    %c0_10 = arith.constant 0 : index
    %18 = vector.load %arg6[%c0_7, %c0_8, %c0_9, %c0_10] : memref<2x4x8x8xf32, #tpu.memory_space<vmem>>, vector<1x1x8x8xf32>
    %19 = vector.shape_cast %18 : vector<1x1x8x8xf32> to vector<8x8xf32>
    %20 = vector.shape_cast %17 : vector<8x8xf32> to vector<1x1x8x8xf32>
    tpu.vector_store %arg6[%c0_7, %c0_8, %c0_9, %c0_10], %20 {strides = array<i32>} : memref<2x4x8x8xf32, #tpu.memory_space<vmem>>, vector<1x1x8x8xf32>,
    %21 = arith.truncf %17 : vector<8x8xf32> to vector<8x8xbf16>
    %cst_11 = arith.constant dense<0.000000e+00> : vector<8x16xf32>
    %22 = tpu.matmul %21, %7, %cst_11 {dimension_numbers = #tpu.dot_dimension_numbers<[1], [0], [0], [1], [0, 0, 1, 1], [], []>} : vector<8x8xbf16>, vector<8x16xbf16>, vector<8x16xf32> -> vector<8x16xf32>
    %23 = arith.truncf %22 : vector<8x16xf32> to vector<8x16xbf16>
    %24 = vector.extract_strided_slice %4 {offsets = [0, 16], sizes = [8, 16], strides = [1, 1]} : vector<16x192xbf16> to vector<8x16xbf16>
    %25 = vector.extract_strided_slice %4 {offsets = [0, 80], sizes = [8, 16], strides = [1, 1]} : vector<16x192xbf16> to vector<8x16xbf16>
    %26 = vector.extract_strided_slice %4 {offsets = [0, 144], sizes = [8, 16], strides = [1, 1]} : vector<16x192xbf16> to vector<8x16xbf16>
    "tpu.trace_start"() <{level = 10 : i32, message = "nd,md->nm"}> : () -> ()
    %cst_12 = arith.constant dense<0.000000e+00> : vector<8x8xf32>
    %27 = tpu.matmul %24, %25, %cst_12 {dimension_numbers = #tpu.dot_dimension_numbers<[1], [1], [0], [0], [0, 0, 1, 0], [], []>} : vector<8x16xbf16>, vector<8x16xbf16>, vector<8x8xf32> -> vector<8x8xf32>
    "tpu.trace_stop"() : () -> ()
    %cst_13 = arith.constant dense<0xFF800000> : vector<8xf32>
    %28 = vector.multi_reduction <maximumf>, %27, %cst_13 [1] : vector<8x8xf32> to vector<8xf32>
    %29 = vector.shape_cast %28 : vector<8xf32> to vector<8x1xf32>
    %30 = vector.broadcast %29 : vector<8x1xf32> to vector<8x8xf32>
    %31 = arith.subf %27, %30 : vector<8x8xf32>
    %32 = math.exp %31 : vector<8x8xf32>
    %cst_14 = arith.constant dense<0.000000e+00> : vector<8xf32>
    %33 = vector.multi_reduction <add>, %32, %cst_14 [1] : vector<8x8xf32> to vector<8xf32>
    %34 = vector.shape_cast %33 : vector<8xf32> to vector<8x1xf32>
    %35 = vector.broadcast %34 : vector<8x1xf32> to vector<8x8xf32>
    %36 = arith.divf %32, %35 : vector<8x8xf32>
    %c0_15 = arith.constant 0 : index
    %c1 = arith.constant 1 : index
    %c0_16 = arith.constant 0 : index
    %c0_17 = arith.constant 0 : index
    %37 = vector.load %arg6[%c0_15, %c1, %c0_16, %c0_17] : memref<2x4x8x8xf32, #tpu.memory_space<vmem>>, vector<1x1x8x8xf32>
    %38 = vector.shape_cast %37 : vector<1x1x8x8xf32> to vector<8x8xf32>
    %39 = vector.shape_cast %36 : vector<8x8xf32> to vector<1x1x8x8xf32>
    tpu.vector_store %arg6[%c0_15, %c1, %c0_16, %c0_17], %39 {strides = array<i32>} : memref<2x4x8x8xf32, #tpu.memory_space<vmem>>, vector<1x1x8x8xf32>,
    %40 = arith.truncf %36 : vector<8x8xf32> to vector<8x8xbf16>
    %cst_18 = arith.constant dense<0.000000e+00> : vector<8x16xf32>
    %41 = tpu.matmul %40, %26, %cst_18 {dimension_numbers = #tpu.dot_dimension_numbers<[1], [0], [0], [1], [0, 0, 1, 1], [], []>} : vector<8x8xbf16>, vector<8x16xbf16>, vector<8x16xf32> -> vector<8x16xf32>
    %42 = arith.truncf %41 : vector<8x16xf32> to vector<8x16xbf16>
    %43 = vector.extract_strided_slice %4 {offsets = [0, 32], sizes = [8, 16], strides = [1, 1]} : vector<16x192xbf16> to vector<8x16xbf16>
    %44 = vector.extract_strided_slice %4 {offsets = [0, 96], sizes = [8, 16], strides = [1, 1]} : vector<16x192xbf16> to vector<8x16xbf16>
    %45 = vector.extract_strided_slice %4 {offsets = [0, 160], sizes = [8, 16], strides = [1, 1]} : vector<16x192xbf16> to vector<8x16xbf16>
    "tpu.trace_start"() <{level = 10 : i32, message = "nd,md->nm"}> : () -> ()
    %cst_19 = arith.constant dense<0.000000e+00> : vector<8x8xf32>
    %46 = tpu.matmul %43, %44, %cst_19 {dimension_numbers = #tpu.dot_dimension_numbers<[1], [1], [0], [0], [0, 0, 1, 0], [], []>} : vector<8x16xbf16>, vector<8x16xbf16>, vector<8x8xf32> -> vector<8x8xf32>
    "tpu.trace_stop"() : () -> ()
    %cst_20 = arith.constant dense<0xFF800000> : vector<8xf32>
    %47 = vector.multi_reduction <maximumf>, %46, %cst_20 [1] : vector<8x8xf32> to vector<8xf32>
    %48 = vector.shape_cast %47 : vector<8xf32> to vector<8x1xf32>
    %49 = vector.broadcast %48 : vector<8x1xf32> to vector<8x8xf32>
    %50 = arith.subf %46, %49 : vector<8x8xf32>
    %51 = math.exp %50 : vector<8x8xf32>
    %cst_21 = arith.constant dense<0.000000e+00> : vector<8xf32>
    %52 = vector.multi_reduction <add>, %51, %cst_21 [1] : vector<8x8xf32> to vector<8xf32>
    %53 = vector.shape_cast %52 : vector<8xf32> to vector<8x1xf32>
    %54 = vector.broadcast %53 : vector<8x1xf32> to vector<8x8xf32>
    %55 = arith.divf %51, %54 : vector<8x8xf32>
    %c0_22 = arith.constant 0 : index
    %c2 = arith.constant 2 : index
    %c0_23 = arith.constant 0 : index
    %c0_24 = arith.constant 0 : index
    %56 = vector.load %arg6[%c0_22, %c2, %c0_23, %c0_24] : memref<2x4x8x8xf32, #tpu.memory_space<vmem>>, vector<1x1x8x8xf32>
    %57 = vector.shape_cast %56 : vector<1x1x8x8xf32> to vector<8x8xf32>
    %58 = vector.shape_cast %55 : vector<8x8xf32> to vector<1x1x8x8xf32>
    tpu.vector_store %arg6[%c0_22, %c2, %c0_23, %c0_24], %58 {strides = array<i32>} : memref<2x4x8x8xf32, #tpu.memory_space<vmem>>, vector<1x1x8x8xf32>,
    %59 = arith.truncf %55 : vector<8x8xf32> to vector<8x8xbf16>
    %cst_25 = arith.constant dense<0.000000e+00> : vector<8x16xf32>
    %60 = tpu.matmul %59, %45, %cst_25 {dimension_numbers = #tpu.dot_dimension_numbers<[1], [0], [0], [1], [0, 0, 1, 1], [], []>} : vector<8x8xbf16>, vector<8x16xbf16>, vector<8x16xf32> -> vector<8x16xf32>
    %61 = arith.truncf %60 : vector<8x16xf32> to vector<8x16xbf16>
    %62 = vector.extract_strided_slice %4 {offsets = [0, 48], sizes = [8, 16], strides = [1, 1]} : vector<16x192xbf16> to vector<8x16xbf16>
    %63 = vector.extract_strided_slice %4 {offsets = [0, 112], sizes = [8, 16], strides = [1, 1]} : vector<16x192xbf16> to vector<8x16xbf16>
    %64 = vector.extract_strided_slice %4 {offsets = [0, 176], sizes = [8, 16], strides = [1, 1]} : vector<16x192xbf16> to vector<8x16xbf16>
    "tpu.trace_start"() <{level = 10 : i32, message = "nd,md->nm"}> : () -> ()
    %cst_26 = arith.constant dense<0.000000e+00> : vector<8x8xf32>
    %65 = tpu.matmul %62, %63, %cst_26 {dimension_numbers = #tpu.dot_dimension_numbers<[1], [1], [0], [0], [0, 0, 1, 0], [], []>} : vector<8x16xbf16>, vector<8x16xbf16>, vector<8x8xf32> -> vector<8x8xf32>
    "tpu.trace_stop"() : () -> ()
    %cst_27 = arith.constant dense<0xFF800000> : vector<8xf32>
    %66 = vector.multi_reduction <maximumf>, %65, %cst_27 [1] : vector<8x8xf32> to vector<8xf32>
    %67 = vector.shape_cast %66 : vector<8xf32> to vector<8x1xf32>
    %68 = vector.broadcast %67 : vector<8x1xf32> to vector<8x8xf32>
    %69 = arith.subf %65, %68 : vector<8x8xf32>
    %70 = math.exp %69 : vector<8x8xf32>
    %cst_28 = arith.constant dense<0.000000e+00> : vector<8xf32>
    %71 = vector.multi_reduction <add>, %70, %cst_28 [1] : vector<8x8xf32> to vector<8xf32>
    %72 = vector.shape_cast %71 : vector<8xf32> to vector<8x1xf32>
    %73 = vector.broadcast %72 : vector<8x1xf32> to vector<8x8xf32>
    %74 = arith.divf %70, %73 : vector<8x8xf32>
    %c0_29 = arith.constant 0 : index
    %c3 = arith.constant 3 : index
    %c0_30 = arith.constant 0 : index
    %c0_31 = arith.constant 0 : index
    %75 = vector.load %arg6[%c0_29, %c3, %c0_30, %c0_31] : memref<2x4x8x8xf32, #tpu.memory_space<vmem>>, vector<1x1x8x8xf32>
    %76 = vector.shape_cast %75 : vector<1x1x8x8xf32> to vector<8x8xf32>
    %77 = vector.shape_cast %74 : vector<8x8xf32> to vector<1x1x8x8xf32>
    tpu.vector_store %arg6[%c0_29, %c3, %c0_30, %c0_31], %77 {strides = array<i32>} : memref<2x4x8x8xf32, #tpu.memory_space<vmem>>, vector<1x1x8x8xf32>,
    %78 = arith.truncf %74 : vector<8x8xf32> to vector<8x8xbf16>
    %cst_32 = arith.constant dense<0.000000e+00> : vector<8x16xf32>
    %79 = tpu.matmul %78, %64, %cst_32 {dimension_numbers = #tpu.dot_dimension_numbers<[1], [0], [0], [1], [0, 0, 1, 1], [], []>} : vector<8x8xbf16>, vector<8x16xbf16>, vector<8x16xf32> -> vector<8x16xf32>
    %80 = arith.truncf %79 : vector<8x16xf32> to vector<8x16xbf16>
    %81 = tpu.concatenate %23, %42, %61, %80 in 1 : vector<8x16xbf16>, vector<8x16xbf16>, vector<8x16xbf16>, vector<8x16xbf16> -> vector<8x64xbf16>
    %82 = vector.extract_strided_slice %4 {offsets = [8, 0], sizes = [8, 16], strides = [1, 1]} : vector<16x192xbf16> to vector<8x16xbf16>
    %83 = vector.extract_strided_slice %4 {offsets = [8, 64], sizes = [8, 16], strides = [1, 1]} : vector<16x192xbf16> to vector<8x16xbf16>
    %84 = vector.extract_strided_slice %4 {offsets = [8, 128], sizes = [8, 16], strides = [1, 1]} : vector<16x192xbf16> to vector<8x16xbf16>
    "tpu.trace_start"() <{level = 10 : i32, message = "nd,md->nm"}> : () -> ()
    %cst_33 = arith.constant dense<0.000000e+00> : vector<8x8xf32>
    %85 = tpu.matmul %82, %83, %cst_33 {dimension_numbers = #tpu.dot_dimension_numbers<[1], [1], [0], [0], [0, 0, 1, 0], [], []>} : vector<8x16xbf16>, vector<8x16xbf16>, vector<8x8xf32> -> vector<8x8xf32>
    "tpu.trace_stop"() : () -> ()
    %cst_34 = arith.constant dense<0xFF800000> : vector<8xf32>
    %86 = vector.multi_reduction <maximumf>, %85, %cst_34 [1] : vector<8x8xf32> to vector<8xf32>
    %87 = vector.shape_cast %86 : vector<8xf32> to vector<8x1xf32>
    %88 = vector.broadcast %87 : vector<8x1xf32> to vector<8x8xf32>
    %89 = arith.subf %85, %88 : vector<8x8xf32>
    %90 = math.exp %89 : vector<8x8xf32>
    %cst_35 = arith.constant dense<0.000000e+00> : vector<8xf32>
    %91 = vector.multi_reduction <add>, %90, %cst_35 [1] : vector<8x8xf32> to vector<8xf32>
    %92 = vector.shape_cast %91 : vector<8xf32> to vector<8x1xf32>
    %93 = vector.broadcast %92 : vector<8x1xf32> to vector<8x8xf32>
    %94 = arith.divf %90, %93 : vector<8x8xf32>
    %c1_36 = arith.constant 1 : index
    %c0_37 = arith.constant 0 : index
    %c0_38 = arith.constant 0 : index
    %c0_39 = arith.constant 0 : index
    %95 = vector.load %arg6[%c1_36, %c0_37, %c0_38, %c0_39] : memref<2x4x8x8xf32, #tpu.memory_space<vmem>>, vector<1x1x8x8xf32>
    %96 = vector.shape_cast %95 : vector<1x1x8x8xf32> to vector<8x8xf32>
    %97 = vector.shape_cast %94 : vector<8x8xf32> to vector<1x1x8x8xf32>
    tpu.vector_store %arg6[%c1_36, %c0_37, %c0_38, %c0_39], %97 {strides = array<i32>} : memref<2x4x8x8xf32, #tpu.memory_space<vmem>>, vector<1x1x8x8xf32>,
    %98 = arith.truncf %94 : vector<8x8xf32> to vector<8x8xbf16>
    %cst_40 = arith.constant dense<0.000000e+00> : vector<8x16xf32>
    %99 = tpu.matmul %98, %84, %cst_40 {dimension_numbers = #tpu.dot_dimension_numbers<[1], [0], [0], [1], [0, 0, 1, 1], [], []>} : vector<8x8xbf16>, vector<8x16xbf16>, vector<8x16xf32> -> vector<8x16xf32>
    %100 = arith.truncf %99 : vector<8x16xf32> to vector<8x16xbf16>
    %101 = vector.extract_strided_slice %4 {offsets = [8, 16], sizes = [8, 16], strides = [1, 1]} : vector<16x192xbf16> to vector<8x16xbf16>
    %102 = vector.extract_strided_slice %4 {offsets = [8, 80], sizes = [8, 16], strides = [1, 1]} : vector<16x192xbf16> to vector<8x16xbf16>
    %103 = vector.extract_strided_slice %4 {offsets = [8, 144], sizes = [8, 16], strides = [1, 1]} : vector<16x192xbf16> to vector<8x16xbf16>
    "tpu.trace_start"() <{level = 10 : i32, message = "nd,md->nm"}> : () -> ()
    %cst_41 = arith.constant dense<0.000000e+00> : vector<8x8xf32>
    %104 = tpu.matmul %101, %102, %cst_41 {dimension_numbers = #tpu.dot_dimension_numbers<[1], [1], [0], [0], [0, 0, 1, 0], [], []>} : vector<8x16xbf16>, vector<8x16xbf16>, vector<8x8xf32> -> vector<8x8xf32>
    "tpu.trace_stop"() : () -> ()
    %cst_42 = arith.constant dense<0xFF800000> : vector<8xf32>
    %105 = vector.multi_reduction <maximumf>, %104, %cst_42 [1] : vector<8x8xf32> to vector<8xf32>
    %106 = vector.shape_cast %105 : vector<8xf32> to vector<8x1xf32>
    %107 = vector.broadcast %106 : vector<8x1xf32> to vector<8x8xf32>
    %108 = arith.subf %104, %107 : vector<8x8xf32>
    %109 = math.exp %108 : vector<8x8xf32>
    %cst_43 = arith.constant dense<0.000000e+00> : vector<8xf32>
    %110 = vector.multi_reduction <add>, %109, %cst_43 [1] : vector<8x8xf32> to vector<8xf32>
    %111 = vector.shape_cast %110 : vector<8xf32> to vector<8x1xf32>
    %112 = vector.broadcast %111 : vector<8x1xf32> to vector<8x8xf32>
    %113 = arith.divf %109, %112 : vector<8x8xf32>
    %c1_44 = arith.constant 1 : index
    %c1_45 = arith.constant 1 : index
    %c0_46 = arith.constant 0 : index
    %c0_47 = arith.constant 0 : index
    %114 = vector.load %arg6[%c1_44, %c1_45, %c0_46, %c0_47] : memref<2x4x8x8xf32, #tpu.memory_space<vmem>>, vector<1x1x8x8xf32>
    %115 = vector.shape_cast %114 : vector<1x1x8x8xf32> to vector<8x8xf32>
    %116 = vector.shape_cast %113 : vector<8x8xf32> to vector<1x1x8x8xf32>
    tpu.vector_store %arg6[%c1_44, %c1_45, %c0_46, %c0_47], %116 {strides = array<i32>} : memref<2x4x8x8xf32, #tpu.memory_space<vmem>>, vector<1x1x8x8xf32>,
    %117 = arith.truncf %113 : vector<8x8xf32> to vector<8x8xbf16>
    %cst_48 = arith.constant dense<0.000000e+00> : vector<8x16xf32>
    %118 = tpu.matmul %117, %103, %cst_48 {dimension_numbers = #tpu.dot_dimension_numbers<[1], [0], [0], [1], [0, 0, 1, 1], [], []>} : vector<8x8xbf16>, vector<8x16xbf16>, vector<8x16xf32> -> vector<8x16xf32>
    %119 = arith.truncf %118 : vector<8x16xf32> to vector<8x16xbf16>
    %120 = vector.extract_strided_slice %4 {offsets = [8, 32], sizes = [8, 16], strides = [1, 1]} : vector<16x192xbf16> to vector<8x16xbf16>
    %121 = vector.extract_strided_slice %4 {offsets = [8, 96], sizes = [8, 16], strides = [1, 1]} : vector<16x192xbf16> to vector<8x16xbf16>
    %122 = vector.extract_strided_slice %4 {offsets = [8, 160], sizes = [8, 16], strides = [1, 1]} : vector<16x192xbf16> to vector<8x16xbf16>
    "tpu.trace_start"() <{level = 10 : i32, message = "nd,md->nm"}> : () -> ()
    %cst_49 = arith.constant dense<0.000000e+00> : vector<8x8xf32>
    %123 = tpu.matmul %120, %121, %cst_49 {dimension_numbers = #tpu.dot_dimension_numbers<[1], [1], [0], [0], [0, 0, 1, 0], [], []>} : vector<8x16xbf16>, vector<8x16xbf16>, vector<8x8xf32> -> vector<8x8xf32>
    "tpu.trace_stop"() : () -> ()
    %cst_50 = arith.constant dense<0xFF800000> : vector<8xf32>
    %124 = vector.multi_reduction <maximumf>, %123, %cst_50 [1] : vector<8x8xf32> to vector<8xf32>
    %125 = vector.shape_cast %124 : vector<8xf32> to vector<8x1xf32>
    %126 = vector.broadcast %125 : vector<8x1xf32> to vector<8x8xf32>
    %127 = arith.subf %123, %126 : vector<8x8xf32>
    %128 = math.exp %127 : vector<8x8xf32>
    %cst_51 = arith.constant dense<0.000000e+00> : vector<8xf32>
    %129 = vector.multi_reduction <add>, %128, %cst_51 [1] : vector<8x8xf32> to vector<8xf32>
    %130 = vector.shape_cast %129 : vector<8xf32> to vector<8x1xf32>
    %131 = vector.broadcast %130 : vector<8x1xf32> to vector<8x8xf32>
    %132 = arith.divf %128, %131 : vector<8x8xf32>
    %c1_52 = arith.constant 1 : index
    %c2_53 = arith.constant 2 : index
    %c0_54 = arith.constant 0 : index
    %c0_55 = arith.constant 0 : index
    %133 = vector.load %arg6[%c1_52, %c2_53, %c0_54, %c0_55] : memref<2x4x8x8xf32, #tpu.memory_space<vmem>>, vector<1x1x8x8xf32>
    %134 = vector.shape_cast %133 : vector<1x1x8x8xf32> to vector<8x8xf32>
    %135 = vector.shape_cast %132 : vector<8x8xf32> to vector<1x1x8x8xf32>
    tpu.vector_store %arg6[%c1_52, %c2_53, %c0_54, %c0_55], %135 {strides = array<i32>} : memref<2x4x8x8xf32, #tpu.memory_space<vmem>>, vector<1x1x8x8xf32>,
    %136 = arith.truncf %132 : vector<8x8xf32> to vector<8x8xbf16>
    %cst_56 = arith.constant dense<0.000000e+00> : vector<8x16xf32>
    %137 = tpu.matmul %136, %122, %cst_56 {dimension_numbers = #tpu.dot_dimension_numbers<[1], [0], [0], [1], [0, 0, 1, 1], [], []>} : vector<8x8xbf16>, vector<8x16xbf16>, vector<8x16xf32> -> vector<8x16xf32>
    %138 = arith.truncf %137 : vector<8x16xf32> to vector<8x16xbf16>
    %139 = vector.extract_strided_slice %4 {offsets = [8, 48], sizes = [8, 16], strides = [1, 1]} : vector<16x192xbf16> to vector<8x16xbf16>
    %140 = vector.extract_strided_slice %4 {offsets = [8, 112], sizes = [8, 16], strides = [1, 1]} : vector<16x192xbf16> to vector<8x16xbf16>
    %141 = vector.extract_strided_slice %4 {offsets = [8, 176], sizes = [8, 16], strides = [1, 1]} : vector<16x192xbf16> to vector<8x16xbf16>
    "tpu.trace_start"() <{level = 10 : i32, message = "nd,md->nm"}> : () -> ()
    %cst_57 = arith.constant dense<0.000000e+00> : vector<8x8xf32>
    %142 = tpu.matmul %139, %140, %cst_57 {dimension_numbers = #tpu.dot_dimension_numbers<[1], [1], [0], [0], [0, 0, 1, 0], [], []>} : vector<8x16xbf16>, vector<8x16xbf16>, vector<8x8xf32> -> vector<8x8xf32>
    "tpu.trace_stop"() : () -> ()
    %cst_58 = arith.constant dense<0xFF800000> : vector<8xf32>
    %143 = vector.multi_reduction <maximumf>, %142, %cst_58 [1] : vector<8x8xf32> to vector<8xf32>
    %144 = vector.shape_cast %143 : vector<8xf32> to vector<8x1xf32>
    %145 = vector.broadcast %144 : vector<8x1xf32> to vector<8x8xf32>
    %146 = arith.subf %142, %145 : vector<8x8xf32>
    %147 = math.exp %146 : vector<8x8xf32>
    %cst_59 = arith.constant dense<0.000000e+00> : vector<8xf32>
    %148 = vector.multi_reduction <add>, %147, %cst_59 [1] : vector<8x8xf32> to vector<8xf32>
    %149 = vector.shape_cast %148 : vector<8xf32> to vector<8x1xf32>
    %150 = vector.broadcast %149 : vector<8x1xf32> to vector<8x8xf32>
    %151 = arith.divf %147, %150 : vector<8x8xf32>
    %c1_60 = arith.constant 1 : index
    %c3_61 = arith.constant 3 : index
    %c0_62 = arith.constant 0 : index
    %c0_63 = arith.constant 0 : index
    %152 = vector.load %arg6[%c1_60, %c3_61, %c0_62, %c0_63] : memref<2x4x8x8xf32, #tpu.memory_space<vmem>>, vector<1x1x8x8xf32>
    %153 = vector.shape_cast %152 : vector<1x1x8x8xf32> to vector<8x8xf32>
    %154 = vector.shape_cast %151 : vector<8x8xf32> to vector<1x1x8x8xf32>
    tpu.vector_store %arg6[%c1_60, %c3_61, %c0_62, %c0_63], %154 {strides = array<i32>} : memref<2x4x8x8xf32, #tpu.memory_space<vmem>>, vector<1x1x8x8xf32>,
    %155 = arith.truncf %151 : vector<8x8xf32> to vector<8x8xbf16>
    %cst_64 = arith.constant dense<0.000000e+00> : vector<8x16xf32>
    %156 = tpu.matmul %155, %141, %cst_64 {dimension_numbers = #tpu.dot_dimension_numbers<[1], [0], [0], [1], [0, 0, 1, 1], [], []>} : vector<8x8xbf16>, vector<8x16xbf16>, vector<8x16xf32> -> vector<8x16xf32>
    %157 = arith.truncf %156 : vector<8x16xf32> to vector<8x16xbf16>
    %158 = tpu.concatenate %100, %119, %138, %157 in 1 : vector<8x16xbf16>, vector<8x16xbf16>, vector<8x16xbf16>, vector<8x16xbf16> -> vector<8x64xbf16>
    %159 = tpu.concatenate %81, %158 in 0 : vector<8x64xbf16>, vector<8x64xbf16> -> vector<16x64xbf16>
    %c0_65 = arith.constant 0 : index
    %c0_66 = arith.constant 0 : index
    %160 = vector.load %arg3[%c0_65, %c0_66] : memref<64x32xbf16, #tpu.memory_space<vmem>>, vector<64x32xbf16>
    %cst_67 = arith.constant dense<0.000000e+00> : vector<16x32xf32>
    %161 = tpu.matmul %159, %160, %cst_67 {dimension_numbers = #tpu.dot_dimension_numbers<[1], [0], [0], [1], [0, 0, 1, 1], [], []>} : vector<16x64xbf16>, vector<64x32xbf16>, vector<16x32xf32> -> vector<16x32xf32>
    %c0_68 = arith.constant 0 : index
    %c0_69 = arith.constant 0 : index
    %162 = vector.load %arg4[%c0_68, %c0_69] : memref<1x32xf32, #tpu.memory_space<vmem>>, vector<1x32xf32>
    %163 = vector.broadcast %162 : vector<1x32xf32> to vector<16x32xf32>
    %164 = arith.addf %161, %163 : vector<16x32xf32>
    %165 = vector.shape_cast %164 : vector<16x32xf32> to vector<2x8x32xf32>
    %c0_70 = arith.constant 0 : index
    %c0_71 = arith.constant 0 : index
    %c0_72 = arith.constant 0 : index
    %166 = vector.load %arg5[%c0_70, %c0_71, %c0_72] : memref<2x8x32xf32, #tpu.memory_space<vmem>>, vector<2x8x32xf32>
    tpu.vector_store %arg5[%c0_70, %c0_71, %c0_72], %165 {strides = array<i32>} : memref<2x8x32xf32, #tpu.memory_space<vmem>>, vector<2x8x32xf32>,
    return
  }
  func.func @transform_0(%arg0: i32) -> (i32, i32, i32) {
    %c0_i32 = arith.constant 0 : i32
    %c0_i32_0 = arith.constant 0 : i32
    %c0_i32_1 = arith.constant 0 : i32
    return %arg0, %c0_i32, %c0_i32_0 : i32, i32, i32
  }
  func.func @transform_1(%arg0: i32) -> (i32, i32) {
    %c0_i32 = arith.constant 0 : i32
    %c0_i32_0 = arith.constant 0 : i32
    %c0_i32_1 = arith.constant 0 : i32
    return %c0_i32, %c0_i32_0 : i32, i32
  }
  func.func @transform_2(%arg0: i32) -> (i32, i32) {
    %c0_i32 = arith.constant 0 : i32
    %c0_i32_0 = arith.constant 0 : i32
    %c0_i32_1 = arith.constant 0 : i32
    return %c0_i32, %c0_i32_0 : i32, i32
  }
  func.func @transform_3(%arg0: i32) -> (i32, i32) {
    %c0_i32 = arith.constant 0 : i32
    %c0_i32_0 = arith.constant 0 : i32
    %c0_i32_1 = arith.constant 0 : i32
    return %c0_i32, %c0_i32_0 : i32, i32
  }
  func.func @transform_4(%arg0: i32) -> (i32, i32, i32) {
    %c0_i32 = arith.constant 0 : i32
    %c0_i32_0 = arith.constant 0 : i32
    %c0_i32_1 = arith.constant 0 : i32
    return %arg0, %c0_i32, %c0_i32_0 : i32, i32, i32
  }
  func.func @transform_5(%arg0: i32) -> (i32, i32, i32, i32) {
    %c0_i32 = arith.constant 0 : i32
    %c0_i32_0 = arith.constant 0 : i32
    %c0_i32_1 = arith.constant 0 : i32
    %c0_i32_2 = arith.constant 0 : i32
    return %arg0, %c0_i32, %c0_i32_0, %c0_i32_1 : i32, i32, i32, i32
  }
}

</mosaic_0001>

<llo_original>
// kernel: tpu_custom_call.1
$region0: #{tpu_custom_call.1}
  #allocation0 [shape = 'u32[]', space=smem, size = 0x4, offset = 0x4, fixed_abs, tag = 'smem constant byte address 0x4 - core index']
  #allocation1 [shape = 'u32[144,128]{1,0:T(1,128)}', space=vmem, size = 0x12000, scoped, tag = 'internal scratch']
  %s0 = inlined_call_operand.vmem [shape: bf16[2,8,32], index: 0, kind: input, shape index: {}]
  %s1 = inlined_call_operand.vmem [shape: bf16[32,192], index: 1, kind: input, shape index: {}]
  %s2 = inlined_call_operand.vmem [shape: bf16[64,32], index: 2, kind: input, shape index: {}]
  %s3 = inlined_call_operand.vmem [shape: f32[1,32], index: 3, kind: input, shape index: {}]
  %s4 = inlined_call_operand.hbm [shape: f32[2,8,32], index: 4, kind: output, shape index: {0}]
  %s5 = inlined_call_operand.hbm [shape: f32[2,4,8,8], index: 5, kind: output, shape index: {1}]
  %6 = xla_tuple %s4, %s5
  %s7 = sld [smem:[#allocation0]]
  $region34: #{tpu_custom_call.1} parent=0
    _
  %s9 = ssub.s32 1, %s7
  %s10 = scalar_select 0, %s9, %s7
  $region1: #{tpu_custom_call.1} parent=0
    #allocation2 [shape = 'u8[8192]{0}', space=vmem, size = 0x2000, scoped, tag = 'output window, operand 0, single buffered']
    #allocation3 [shape = 's32[1]{0}', space=sflag, size = 0x4, scoped, tag = 'scoped memory for tpu_custom_call.1']
    #allocation4 [shape = 'u8[32768]{0}', space=vmem, size = 0x8000, scoped, tag = 'output window, operand 1, single buffered']
    #allocation5 [shape = 's32[1]{0}', space=sflag, size = 0x4, scoped, tag = 'scoped memory for tpu_custom_call.1']
    %11 = vsyncpa [#allocation3], 0
    %12 = vsyncpa [#allocation5], 0
    // Predicated region
    $region2: #{tpu_custom_call.1} parent=1 // pred_check
      _
    $region3: #{tpu_custom_call.1} parent=1 // pred_check_branch
      %14 = sbr.rel (0) target = $region5
    $region4: #{tpu_custom_call.1} parent=1 // pred_region
      _
    $region5: #{tpu_custom_call.1} parent=1 // pred_fallthru
      _
    // Predicated region
    $region6: #{tpu_custom_call.1} parent=1 // pred_check
      _
    $region7: #{tpu_custom_call.1} parent=1 // pred_check_branch
      %16 = sbr.rel (0) target = $region9
    $region8: #{tpu_custom_call.1} parent=1 // pred_region
      _
    $region9: #{tpu_custom_call.1} parent=1 // pred_fallthru
      _
    // Predicated region
    $region10: #{tpu_custom_call.1} parent=1 // pred_check
      _
    $region11: #{tpu_custom_call.1} parent=1 // pred_check_branch
      %18 = sbr.rel (0) target = $region13
    $region12: #{tpu_custom_call.1} parent=1 // pred_region
      _
    $region13: #{tpu_custom_call.1} parent=1 // pred_fallthru
      _
    // Predicated region
    $region14: #{tpu_custom_call.1} parent=1 // pred_check
      _
    $region15: #{tpu_custom_call.1} parent=1 // pred_check_branch
      %20 = sbr.rel (0) target = $region17
    $region16: #{tpu_custom_call.1} parent=1 // pred_region
      _
    $region17: #{tpu_custom_call.1} parent=1 // pred_fallthru
      _
    %v22 = vld [vmem:[%s0] sm:$0xf]
    %v23 = vld [vmem:[%s0 + $0x4] sm:$0xf]
    %v24 = vld [vmem:[%s1] sm:$0xff]
    %v25 = vld [vmem:[%s1 + $0x8] sm:$0xff]
    %v26 = vld [vmem:[%s1 + $0x10] sm:$0xff]
    %v27 = vld [vmem:[%s1 + $0x18] sm:$0xff]
    %v30 = vunpack.c.l.b16 %v22
    %v31 = vunpack.c.l.b16 %v23
    %v32 = vpack.c.b16 %v31, %v30
    %v37 = vunpack.c.l.b16 %v24
    %v38 = vunpack.c.h.b16 %v24
    %v39 = vunpack.c.l.b16 %v25
    %v40 = vunpack.c.h.b16 %v25
    %v41 = vunpack.c.l.b16 %v26
    %v42 = vunpack.c.h.b16 %v26
    %v43 = vunpack.c.l.b16 %v27
    %v44 = vunpack.c.h.b16 %v27
    %v45 = vpack.c.b16 %v39, %v37
    %v46 = vpack.c.b16 %v40, %v38
    %v47 = vpack.c.b16 %v43, %v41
    %v48 = vpack.c.b16 %v44, %v42
    %vm53 = vcmask 261120
    %v55 = vsel %vm53, %v32, 0
    %57 = vmatprep.subr.bf16.mxu0 %v46
    %58 = vmatpush1.bf16.msra.mxu0 %v45
    %59 = vmatprep.subr.bf16.mxu0 %v48
    %60 = vmatpush1.bf16.msra.mxu0 %v47
    %61 = vmatprep.subr.bf16.mxu0 0
    %62 = vmatpush1.bf16.msra.mxu0 0
    %63 = vmatprep.subr.bf16.mxu0 0
    %64 = vmatpush1.bf16.msra.mxu0 0
    %65 = vmatprep.subr.bf16.mxu0 0
    %66 = vmatpush1.bf16.msra.mxu0 0
    %67 = vmatprep.subr.bf16.mxu0 0
    %68 = vmatpush1.bf16.msra.mxu0 0
    %69 = vmatprep.subr.bf16.mxu0 0
    %70 = vmatpush1.bf16.msra.mxu0 0
    %71 = vmatprep.subr.bf16.mxu0 0
    %72 = vmatpush1.bf16.msra.mxu0 0
    %73 = vmatprep.subr.bf16.mxu0 0
    %74 = vmatpush1.bf16.msra.mxu0 0
    %75 = vmatprep.subr.bf16.mxu0 0
    %76 = vmatpush1.bf16.msra.mxu0 0
    %77 = vmatprep.subr.bf16.mxu0 0
    %78 = vmatpush1.bf16.msra.mxu0 0
    %79 = vmatprep.subr.bf16.mxu0 0
    %80 = vmatpush1.bf16.msra.mxu0 0
    %81 = vmatprep.subr.bf16.mxu0 0
    %82 = vmatpush1.bf16.msra.mxu0 0
    %83 = vmatprep.subr.bf16.mxu0 0
    %84 = vmatpush1.bf16.msra.mxu0 0
    %85 = vmatprep.subr.bf16.mxu0 0
    %86 = vmatpush1.bf16.msra.mxu0 0
    %87 = vmatprep.subr.bf16.mxu0 0
    %88 = vmatpush1.bf16.msra.mxu0 0
    %89 = vmatprep.mubr.bf16.mxu0 0
    %90 = vmatmul.mubr.bf16.gmra.mrb[0].mxu0 %v55
    %v91 = vpop.f32.mrb[0].mxu0
    %v92 = vadd.f32 0.0, %v91
    %v93 = vpop.f32.mrb[0].mxu0
    %v94 = vadd.f32 0.0, %v93
    %v95 = vpop.f32.mrb[0].mxu0
    %v96 = vadd.f32 0.0, %v95
    %v97 = vpop.f32.mrb[0].mxu0
    %v98 = vadd.f32 0.0, %v97
    %99 = vdwg.mxu0
    %v100 = vpack.c.bf16 %v96, %v92
    %v101 = vpack.c.bf16 %v98, %v94
    %103 = vrot.lane.b32.xlu0 %v100, 64
    %v104 = vpop.permute.xlu0 %103
    %vm105 = vcmask 130048
    %v107 = vsel %vm105, %v100, 0
    %v110 = vsel %vm105, %v104, 0
    %112 = vmatprep.subr.bf16.mxu0 0
    %113 = vmatpush1.bf16.xpose.msra.mxu0 %v110
    %114 = vmatprep.subr.bf16.mxu0 0
    %115 = vmatpush1.bf16.xpose.msra.mxu0 0
    %116 = vmatprep.subr.bf16.mxu0 0
    %117 = vmatpush1.bf16.xpose.msra.mxu0 0
    %118 = vmatprep.subr.bf16.mxu0 0
    %119 = vmatpush1.bf16.xpose.msra.mxu0 0
    %120 = vmatprep.subr.bf16.mxu0 0
    %121 = vmatpush1.bf16.xpose.msra.mxu0 0
    %122 = vmatprep.subr.bf16.mxu0 0
    %123 = vmatpush1.bf16.xpose.msra.mxu0 0
    %124 = vmatprep.subr.bf16.mxu0 0
    %125 = vmatpush1.bf16.xpose.msra.mxu0 0
    %126 = vmatprep.subr.bf16.mxu0 0
    %127 = vmatpush1.bf16.xpose.msra.mxu0 0
    %128 = vmatprep.subr.bf16.mxu0 0
    %129 = vmatpush1.bf16.xpose.msra.mxu0 0
    %130 = vmatprep.subr.bf16.mxu0 0
    %131 = vmatpush1.bf16.xpose.msra.mxu0 0
    %132 = vmatprep.subr.bf16.mxu0 0
    %133 = vmatpush1.bf16.xpose.msra.mxu0 0
    %134 = vmatprep.subr.bf16.mxu0 0
    %135 = vmatpush1.bf16.xpose.msra.mxu0 0
    %136 = vmatprep.subr.bf16.mxu0 0
    %137 = vmatpush1.bf16.xpose.msra.mxu0 0
    %138 = vmatprep.subr.bf16.mxu0 0
    %139 = vmatpush1.bf16.xpose.msra.mxu0 0
    %140 = vmatprep.subr.bf16.mxu0 0
    %141 = vmatpush1.bf16.xpose.msra.mxu0 0
    %142 = vmatprep.subr.bf16.mxu0 0
    %143 = vmatpush1.bf16.xpose.msra.mxu0 0
    %144 = vmatprep.mubr.bf16.mxu0 0
    %145 = vmatmul.mubr.bf16.gmra.mrb[0].mxu0 %v107
    %v146 = vpop.f32.mrb[0].mxu0
    %v147 = vadd.f32 0.0, %v146
    %v148 = vpop.f32.mrb[0].mxu0
    %v149 = vpop.f32.mrb[0].mxu0
    %v150 = vpop.f32.mrb[0].mxu0
    %151 = vdwg.mxu0
    %vm152 = vcmask 64512
    %v153 = vsel %vm152, %v147, -inf
    %154 = vmax.xlane.f32.xlu0 %v153
    %v155 = vpop.xlane.xlu0 %154
    %v156 = vsub.f32 %v147, %v155
    %v157 = vmul.f32 %v156, 1.442695
    %v158 = vpow.pop %v157
    %v159 = vsel %vm152, %v158, 0.0
    %160 = vadd.xlane.f32.xlu0 %v159
    %v161 = vpop.xlane.xlu0 %160
    %v162 = vrcp.pop %v161
    %v163 = vmul.f32 %v158, %v162
    %164 = vst.msk [vmem:[#allocation4] sm:$0xff] %vm152, %v163
    %v165 = vpack.c.bf16 %v163, %v163
    %v167 = vsel %vm152, %v165, 0
    %vm169 = vcmask 1043456
    %v171 = vsel %vm169, %v101, 0
    %173 = vmatprep.subr.bf16.mxu0 0
    %174 = vmatpush1.bf16.msra.mxu0 %v171
    %175 = vmatprep.subr.bf16.mxu0 0
    %176 = vmatpush1.bf16.msra.mxu0 0
    %177 = vmatprep.subr.bf16.mxu0 0
    %178 = vmatpush1.bf16.msra.mxu0 0
    %179 = vmatprep.subr.bf16.mxu0 0
    %180 = vmatpush1.bf16.msra.mxu0 0
    %181 = vmatprep.subr.bf16.mxu0 0
    %182 = vmatpush1.bf16.msra.mxu0 0
    %183 = vmatprep.subr.bf16.mxu0 0
    %184 = vmatpush1.bf16.msra.mxu0 0
    %185 = vmatprep.subr.bf16.mxu0 0
    %186 = vmatpush1.bf16.msra.mxu0 0
    %187 = vmatprep.subr.bf16.mxu0 0
    %188 = vmatpush1.bf16.msra.mxu0 0
    %189 = vmatprep.subr.bf16.mxu0 0
    %190 = vmatpush1.bf16.msra.mxu0 0
    %191 = vmatprep.subr.bf16.mxu0 0
    %192 = vmatpush1.bf16.msra.mxu0 0
    %193 = vmatprep.subr.bf16.mxu0 0
    %194 = vmatpush1.bf16.msra.mxu0 0
    %195 = vmatprep.subr.bf16.mxu0 0
    %196 = vmatpush1.bf16.msra.mxu0 0
    %197 = vmatprep.subr.bf16.mxu0 0
    %198 = vmatpush1.bf16.msra.mxu0 0
    %199 = vmatprep.subr.bf16.mxu0 0
    %200 = vmatpush1.bf16.msra.mxu0 0
    %201 = vmatprep.subr.bf16.mxu0 0
    %202 = vmatpush1.bf16.msra.mxu0 0
    %203 = vmatprep.subr.bf16.mxu0 0
    %204 = vmatpush1.bf16.msra.mxu0 0
    %205 = vmatprep.mubr.bf16.mxu0 0
    %206 = vmatmul.mubr.bf16.gmra.mrb[0].mxu0 %v167
    %v207 = vpop.f32.mrb[0].mxu0
    %v208 = vadd.f32 0.0, %v207
    %v209 = vpop.f32.mrb[0].mxu0
    %v210 = vpop.f32.mrb[0].mxu0
    %v211 = vpop.f32.mrb[0].mxu0
    %212 = vdwg.mxu0
    %v213 = vpack.c.bf16 %v208, %v208
    %214 = vrot.lane.b32.xlu0 %v100, 112
    %v215 = vpop.permute.xlu0 %214
    %216 = vrot.lane.b32.xlu0 %v100, 48
    %v217 = vpop.permute.xlu0 %216
    %v219 = vsel %vm105, %v215, 0
    %v222 = vsel %vm105, %v217, 0
    %224 = vmatprep.subr.bf16.mxu0 0
    %225 = vmatpush1.bf16.xpose.msra.mxu0 %v222
    %226 = vmatprep.subr.bf16.mxu0 0
    %227 = vmatpush1.bf16.xpose.msra.mxu0 0
    %228 = vmatprep.subr.bf16.mxu0 0
    %229 = vmatpush1.bf16.xpose.msra.mxu0 0
    %230 = vmatprep.subr.bf16.mxu0 0
    %231 = vmatpush1.bf16.xpose.msra.mxu0 0
    %232 = vmatprep.subr.bf16.mxu0 0
    %233 = vmatpush1.bf16.xpose.msra.mxu0 0
    %234 = vmatprep.subr.bf16.mxu0 0
    %235 = vmatpush1.bf16.xpose.msra.mxu0 0
    %236 = vmatprep.subr.bf16.mxu0 0
    %237 = vmatpush1.bf16.xpose.msra.mxu0 0
    %238 = vmatprep.subr.bf16.mxu0 0
    %239 = vmatpush1.bf16.xpose.msra.mxu0 0
    %240 = vmatprep.subr.bf16.mxu0 0
    %241 = vmatpush1.bf16.xpose.msra.mxu0 0
    %242 = vmatprep.subr.bf16.mxu0 0
    %243 = vmatpush1.bf16.xpose.msra.mxu0 0
    %244 = vmatprep.subr.bf16.mxu0 0
    %245 = vmatpush1.bf16.xpose.msra.mxu0 0
    %246 = vmatprep.subr.bf16.mxu0 0
    %247 = vmatpush1.bf16.xpose.msra.mxu0 0
    %248 = vmatprep.subr.bf16.mxu0 0
    %249 = vmatpush1.bf16.xpose.msra.mxu0 0
    %250 = vmatprep.subr.bf16.mxu0 0
    %251 = vmatpush1.bf16.xpose.msra.mxu0 0
    %252 = vmatprep.subr.bf16.mxu0 0
    %253 = vmatpush1.bf16.xpose.msra.mxu0 0
    %254 = vmatprep.subr.bf16.mxu0 0
    %255 = vmatpush1.bf16.xpose.msra.mxu0 0
    %256 = vmatprep.mubr.bf16.mxu0 0
    %257 = vmatmul.mubr.bf16.gmra.mrb[0].mxu0 %v219
    %v258 = vpop.f32.mrb[0].mxu0
    %v259 = vadd.f32 0.0, %v258
    %v260 = vpop.f32.mrb[0].mxu0
    %v261 = vpop.f32.mrb[0].mxu0
    %v262 = vpop.f32.mrb[0].mxu0
    %263 = vdwg.mxu0
    %v264 = vsel %vm152, %v259, -inf
    %265 = vmax.xlane.f32.xlu0 %v264
    %v266 = vpop.xlane.xlu0 %265
    %v267 = vsub.f32 %v259, %v266
    %v268 = vmul.f32 %v267, 1.442695
    %v269 = vpow.pop %v268
    %v270 = vsel %vm152, %v269, 0.0
    %271 = vadd.xlane.f32.xlu0 %v270
    %v272 = vpop.xlane.xlu0 %271
    %v273 = vrcp.pop %v272
    %v274 = vmul.f32 %v269, %v273
    %s275 = scalar_lea.vmem [#allocation4], 8
    %276 = vst.msk [vmem:[%s275] sm:$0xff] %vm152, %v274
    %v277 = vpack.c.bf16 %v274, %v274
    %279 = vrot.lane.b32.xlu0 %v101, 112
    %v280 = vpop.permute.xlu0 %279
    %v282 = vsel %vm152, %v277, 0
    %v285 = vsel %vm169, %v280, 0
    %287 = vmatprep.subr.bf16.mxu0 0
    %288 = vmatpush1.bf16.msra.mxu0 %v285
    %289 = vmatprep.subr.bf16.mxu0 0
    %290 = vmatpush1.bf16.msra.mxu0 0
    %291 = vmatprep.subr.bf16.mxu0 0
    %292 = vmatpush1.bf16.msra.mxu0 0
    %293 = vmatprep.subr.bf16.mxu0 0
    %294 = vmatpush1.bf16.msra.mxu0 0
    %295 = vmatprep.subr.bf16.mxu0 0
    %296 = vmatpush1.bf16.msra.mxu0 0
    %297 = vmatprep.subr.bf16.mxu0 0
    %298 = vmatpush1.bf16.msra.mxu0 0
    %299 = vmatprep.subr.bf16.mxu0 0
    %300 = vmatpush1.bf16.msra.mxu0 0
    %301 = vmatprep.subr.bf16.mxu0 0
    %302 = vmatpush1.bf16.msra.mxu0 0
    %303 = vmatprep.subr.bf16.mxu0 0
    %304 = vmatpush1.bf16.msra.mxu0 0
    %305 = vmatprep.subr.bf16.mxu0 0
    %306 = vmatpush1.bf16.msra.mxu0 0
    %307 = vmatprep.subr.bf16.mxu0 0
    %308 = vmatpush1.bf16.msra.mxu0 0
    %309 = vmatprep.subr.bf16.mxu0 0
    %310 = vmatpush1.bf16.msra.mxu0 0
    %311 = vmatprep.subr.bf16.mxu0 0
    %312 = vmatpush1.bf16.msra.mxu0 0
    %313 = vmatprep.subr.bf16.mxu0 0
    %314 = vmatpush1.bf16.msra.mxu0 0
    %315 = vmatprep.subr.bf16.mxu0 0
    %316 = vmatpush1.bf16.msra.mxu0 0
    %317 = vmatprep.subr.bf16.mxu0 0
    %318 = vmatpush1.bf16.msra.mxu0 0
    %319 = vmatprep.mubr.bf16.mxu0 0
    %320 = vmatmul.mubr.bf16.gmra.mrb[0].mxu0 %v282
    %v321 = vpop.f32.mrb[0].mxu0
    %v322 = vadd.f32 0.0, %v321
    %v323 = vpop.f32.mrb[0].mxu0
    %v324 = vpop.f32.mrb[0].mxu0
    %v325 = vpop.f32.mrb[0].mxu0
    %326 = vdwg.mxu0
    %v327 = vpack.c.bf16 %v322, %v322
    %328 = vrot.lane.b32.xlu0 %v100, 96
    %v329 = vpop.permute.xlu0 %328
    %330 = vrot.lane.b32.xlu0 %v100, 32
    %v331 = vpop.permute.xlu0 %330
    %v333 = vsel %vm105, %v329, 0
    %v336 = vsel %vm105, %v331, 0
    %338 = vmatprep.subr.bf16.mxu0 0
    %339 = vmatpush1.bf16.xpose.msra.mxu0 %v336
    %340 = vmatprep.subr.bf16.mxu0 0
    %341 = vmatpush1.bf16.xpose.msra.mxu0 0
    %342 = vmatprep.subr.bf16.mxu0 0
    %343 = vmatpush1.bf16.xpose.msra.mxu0 0
    %344 = vmatprep.subr.bf16.mxu0 0
    %345 = vmatpush1.bf16.xpose.msra.mxu0 0
    %346 = vmatprep.subr.bf16.mxu0 0
    %347 = vmatpush1.bf16.xpose.msra.mxu0 0
    %348 = vmatprep.subr.bf16.mxu0 0
    %349 = vmatpush1.bf16.xpose.msra.mxu0 0
    %350 = vmatprep.subr.bf16.mxu0 0
    %351 = vmatpush1.bf16.xpose.msra.mxu0 0
    %352 = vmatprep.subr.bf16.mxu0 0
    %353 = vmatpush1.bf16.xpose.msra.mxu0 0
    %354 = vmatprep.subr.bf16.mxu0 0
    %355 = vmatpush1.bf16.xpose.msra.mxu0 0
    %356 = vmatprep.subr.bf16.mxu0 0
    %357 = vmatpush1.bf16.xpose.msra.mxu0 0
    %358 = vmatprep.subr.bf16.mxu0 0
    %359 = vmatpush1.bf16.xpose.msra.mxu0 0
    %360 = vmatprep.subr.bf16.mxu0 0
    %361 = vmatpush1.bf16.xpose.msra.mxu0 0
    %362 = vmatprep.subr.bf16.mxu0 0
    %363 = vmatpush1.bf16.xpose.msra.mxu0 0
    %364 = vmatprep.subr.bf16.mxu0 0
    %365 = vmatpush1.bf16.xpose.msra.mxu0 0
    %366 = vmatprep.subr.bf16.mxu0 0
    %367 = vmatpush1.bf16.xpose.msra.mxu0 0
    %368 = vmatprep.subr.bf16.mxu0 0
    %369 = vmatpush1.bf16.xpose.msra.mxu0 0
    %370 = vmatprep.mubr.bf16.mxu0 0
    %371 = vmatmul.mubr.bf16.gmra.mrb[0].mxu0 %v333
    %v372 = vpop.f32.mrb[0].mxu0
    %v373 = vadd.f32 0.0, %v372
    %v374 = vpop.f32.mrb[0].mxu0
    %v375 = vpop.f32.mrb[0].mxu0
    %v376 = vpop.f32.mrb[0].mxu0
    %377 = vdwg.mxu0
    %v378 = vsel %vm152, %v373, -inf
    %379 = vmax.xlane.f32.xlu0 %v378
    %v380 = vpop.xlane.xlu0 %379
    %v381 = vsub.f32 %v373, %v380
    %v382 = vmul.f32 %v381, 1.442695
    %v383 = vpow.pop %v382
    %v384 = vsel %vm152, %v383, 0.0
    %385 = vadd.xlane.f32.xlu0 %v384
    %v386 = vpop.xlane.xlu0 %385
    %v387 = vrcp.pop %v386
    %v388 = vmul.f32 %v383, %v387
    %s389 = scalar_lea.vmem [#allocation4], 16
    %390 = vst.msk [vmem:[%s389] sm:$0xff] %vm152, %v388
    %v391 = vpack.c.bf16 %v388, %v388
    %392 = vrot.lane.b32.xlu0 %v101, 96
    %v393 = vpop.permute.xlu0 %392
    %v395 = vsel %vm152, %v391, 0
    %v398 = vsel %vm169, %v393, 0
    %400 = vmatprep.subr.bf16.mxu0 0
    %401 = vmatpush1.bf16.msra.mxu0 %v398
    %402 = vmatprep.subr.bf16.mxu0 0
    %403 = vmatpush1.bf16.msra.mxu0 0
    %404 = vmatprep.subr.bf16.mxu0 0
    %405 = vmatpush1.bf16.msra.mxu0 0
    %406 = vmatprep.subr.bf16.mxu0 0
    %407 = vmatpush1.bf16.msra.mxu0 0
    %408 = vmatprep.subr.bf16.mxu0 0
    %409 = vmatpush1.bf16.msra.mxu0 0
    %410 = vmatprep.subr.bf16.mxu0 0
    %411 = vmatpush1.bf16.msra.mxu0 0
    %412 = vmatprep.subr.bf16.mxu0 0
    %413 = vmatpush1.bf16.msra.mxu0 0
    %414 = vmatprep.subr.bf16.mxu0 0
    %415 = vmatpush1.bf16.msra.mxu0 0
    %416 = vmatprep.subr.bf16.mxu0 0
    %417 = vmatpush1.bf16.msra.mxu0 0
    %418 = vmatprep.subr.bf16.mxu0 0
    %419 = vmatpush1.bf16.msra.mxu0 0
    %420 = vmatprep.subr.bf16.mxu0 0
    %421 = vmatpush1.bf16.msra.mxu0 0
    %422 = vmatprep.subr.bf16.mxu0 0
    %423 = vmatpush1.bf16.msra.mxu0 0
    %424 = vmatprep.subr.bf16.mxu0 0
    %425 = vmatpush1.bf16.msra.mxu0 0
    %426 = vmatprep.subr.bf16.mxu0 0
    %427 = vmatpush1.bf16.msra.mxu0 0
    %428 = vmatprep.subr.bf16.mxu0 0
    %429 = vmatpush1.bf16.msra.mxu0 0
    %430 = vmatprep.subr.bf16.mxu0 0
    %431 = vmatpush1.bf16.msra.mxu0 0
    %432 = vmatprep.mubr.bf16.mxu0 0
    %433 = vmatmul.mubr.bf16.gmra.mrb[0].mxu0 %v395
    %v434 = vpop.f32.mrb[0].mxu0
    %v435 = vadd.f32 0.0, %v434
    %v436 = vpop.f32.mrb[0].mxu0
    %v437 = vpop.f32.mrb[0].mxu0
    %v438 = vpop.f32.mrb[0].mxu0
    %439 = vdwg.mxu0
    %v440 = vpack.c.bf16 %v435, %v435
    %441 = vrot.lane.b32.xlu0 %v100, 80
    %v442 = vpop.permute.xlu0 %441
    %443 = vrot.lane.b32.xlu0 %v100, 16
    %v444 = vpop.permute.xlu0 %443
    %v446 = vsel %vm105, %v442, 0
    %v449 = vsel %vm105, %v444, 0
    %451 = vmatprep.subr.bf16.mxu0 0
    %452 = vmatpush1.bf16.xpose.msra.mxu0 %v449
    %453 = vmatprep.subr.bf16.mxu0 0
    %454 = vmatpush1.bf16.xpose.msra.mxu0 0
    %455 = vmatprep.subr.bf16.mxu0 0
    %456 = vmatpush1.bf16.xpose.msra.mxu0 0
    %457 = vmatprep.subr.bf16.mxu0 0
    %458 = vmatpush1.bf16.xpose.msra.mxu0 0
    %459 = vmatprep.subr.bf16.mxu0 0
    %460 = vmatpush1.bf16.xpose.msra.mxu0 0
    %461 = vmatprep.subr.bf16.mxu0 0
    %462 = vmatpush1.bf16.xpose.msra.mxu0 0
    %463 = vmatprep.subr.bf16.mxu0 0
    %464 = vmatpush1.bf16.xpose.msra.mxu0 0
    %465 = vmatprep.subr.bf16.mxu0 0
    %466 = vmatpush1.bf16.xpose.msra.mxu0 0
    %467 = vmatprep.subr.bf16.mxu0 0
    %468 = vmatpush1.bf16.xpose.msra.mxu0 0
    %469 = vmatprep.subr.bf16.mxu0 0
    %470 = vmatpush1.bf16.xpose.msra.mxu0 0
    %471 = vmatprep.subr.bf16.mxu0 0
    %472 = vmatpush1.bf16.xpose.msra.mxu0 0
    %473 = vmatprep.subr.bf16.mxu0 0
    %474 = vmatpush1.bf16.xpose.msra.mxu0 0
    %475 = vmatprep.subr.bf16.mxu0 0
    %476 = vmatpush1.bf16.xpose.msra.mxu0 0
    %477 = vmatprep.subr.bf16.mxu0 0
    %478 = vmatpush1.bf16.xpose.msra.mxu0 0
    %479 = vmatprep.subr.bf16.mxu0 0
    %480 = vmatpush1.bf16.xpose.msra.mxu0 0
    %481 = vmatprep.subr.bf16.mxu0 0
    %482 = vmatpush1.bf16.xpose.msra.mxu0 0
    %483 = vmatprep.mubr.bf16.mxu0 0
    %484 = vmatmul.mubr.bf16.gmra.mrb[0].mxu0 %v446
    %v485 = vpop.f32.mrb[0].mxu0
    %v486 = vadd.f32 0.0, %v485
    %v487 = vpop.f32.mrb[0].mxu0
    %v488 = vpop.f32.mrb[0].mxu0
    %v489 = vpop.f32.mrb[0].mxu0
    %490 = vdwg.mxu0
    %v491 = vsel %vm152, %v486, -inf
    %492 = vmax.xlane.f32.xlu0 %v491
    %v493 = vpop.xlane.xlu0 %492
    %v494 = vsub.f32 %v486, %v493
    %v495 = vmul.f32 %v494, 1.442695
    %v496 = vpow.pop %v495
    %v497 = vsel %vm152, %v496, 0.0
    %498 = vadd.xlane.f32.xlu0 %v497
    %v499 = vpop.xlane.xlu0 %498
    %v500 = vrcp.pop %v499
    %v501 = vmul.f32 %v496, %v500
    %s502 = scalar_lea.vmem [#allocation4], 24
    %503 = vst.msk [vmem:[%s502] sm:$0xff] %vm152, %v501
    %v504 = vpack.c.bf16 %v501, %v501
    %505 = vrot.lane.b32.xlu0 %v101, 80
    %v506 = vpop.permute.xlu0 %505
    %v508 = vsel %vm152, %v504, 0
    %v511 = vsel %vm169, %v506, 0
    %513 = vmatprep.subr.bf16.mxu0 0
    %514 = vmatpush1.bf16.msra.mxu0 %v511
    %515 = vmatprep.subr.bf16.mxu0 0
    %516 = vmatpush1.bf16.msra.mxu0 0
    %517 = vmatprep.subr.bf16.mxu0 0
    %518 = vmatpush1.bf16.msra.mxu0 0
    %519 = vmatprep.subr.bf16.mxu0 0
    %520 = vmatpush1.bf16.msra.mxu0 0
    %521 = vmatprep.subr.bf16.mxu0 0
    %522 = vmatpush1.bf16.msra.mxu0 0
    %523 = vmatprep.subr.bf16.mxu0 0
    %524 = vmatpush1.bf16.msra.mxu0 0
    %525 = vmatprep.subr.bf16.mxu0 0
    %526 = vmatpush1.bf16.msra.mxu0 0
    %527 = vmatprep.subr.bf16.mxu0 0
    %528 = vmatpush1.bf16.msra.mxu0 0
    %529 = vmatprep.subr.bf16.mxu0 0
    %530 = vmatpush1.bf16.msra.mxu0 0
    %531 = vmatprep.subr.bf16.mxu0 0
    %532 = vmatpush1.bf16.msra.mxu0 0
    %533 = vmatprep.subr.bf16.mxu0 0
    %534 = vmatpush1.bf16.msra.mxu0 0
    %535 = vmatprep.subr.bf16.mxu0 0
    %536 = vmatpush1.bf16.msra.mxu0 0
    %537 = vmatprep.subr.bf16.mxu0 0
    %538 = vmatpush1.bf16.msra.mxu0 0
    %539 = vmatprep.subr.bf16.mxu0 0
    %540 = vmatpush1.bf16.msra.mxu0 0
    %541 = vmatprep.subr.bf16.mxu0 0
    %542 = vmatpush1.bf16.msra.mxu0 0
    %543 = vmatprep.subr.bf16.mxu0 0
    %544 = vmatpush1.bf16.msra.mxu0 0
    %545 = vmatprep.mubr.bf16.mxu0 0
    %546 = vmatmul.mubr.bf16.gmra.mrb[0].mxu0 %v508
    %v547 = vpop.f32.mrb[0].mxu0
    %v548 = vadd.f32 0.0, %v547
    %v549 = vpop.f32.mrb[0].mxu0
    %v550 = vpop.f32.mrb[0].mxu0
    %v551 = vpop.f32.mrb[0].mxu0
    %552 = vdwg.mxu0
    %v553 = vpack.c.bf16 %v548, %v548
    %555 = vrot.lane.b32.xlu0 %v327, 16
    %v556 = vpop.permute.xlu0 %555
    %558 = vrot.lane.b32.xlu0 %v440, 32
    %v559 = vpop.permute.xlu0 %558
    %561 = vrot.lane.b32.xlu0 %v553, 48
    %v562 = vpop.permute.xlu0 %561
    %v565 = vsel %vm105, %v213, %v556
    %v567 = vsel %vm53, %v565, %v559
    %vm568 = vcmask 392192
    %v570 = vsel %vm568, %v567, %v562
    %v571 = vrot.slane %v100, 4
    %572 = vrot.lane.b32.xlu0 %v571, 64
    %v573 = vpop.permute.xlu0 %572
    %v575 = vsel %vm105, %v571, 0
    %v578 = vsel %vm105, %v573, 0
    %580 = vmatprep.subr.bf16.mxu0 0
    %581 = vmatpush1.bf16.xpose.msra.mxu0 %v578
    %582 = vmatprep.subr.bf16.mxu0 0
    %583 = vmatpush1.bf16.xpose.msra.mxu0 0
    %584 = vmatprep.subr.bf16.mxu0 0
    %585 = vmatpush1.bf16.xpose.msra.mxu0 0
    %586 = vmatprep.subr.bf16.mxu0 0
    %587 = vmatpush1.bf16.xpose.msra.mxu0 0
    %588 = vmatprep.subr.bf16.mxu0 0
    %589 = vmatpush1.bf16.xpose.msra.mxu0 0
    %590 = vmatprep.subr.bf16.mxu0 0
    %591 = vmatpush1.bf16.xpose.msra.mxu0 0
    %592 = vmatprep.subr.bf16.mxu0 0
    %593 = vmatpush1.bf16.xpose.msra.mxu0 0
    %594 = vmatprep.subr.bf16.mxu0 0
    %595 = vmatpush1.bf16.xpose.msra.mxu0 0
    %596 = vmatprep.subr.bf16.mxu0 0
    %597 = vmatpush1.bf16.xpose.msra.mxu0 0
    %598 = vmatprep.subr.bf16.mxu0 0
    %599 = vmatpush1.bf16.xpose.msra.mxu0 0
    %600 = vmatprep.subr.bf16.mxu0 0
    %601 = vmatpush1.bf16.xpose.msra.mxu0 0
    %602 = vmatprep.subr.bf16.mxu0 0
    %603 = vmatpush1.bf16.xpose.msra.mxu0 0
    %604 = vmatprep.subr.bf16.mxu0 0
    %605 = vmatpush1.bf16.xpose.msra.mxu0 0
    %606 = vmatprep.subr.bf16.mxu0 0
    %607 = vmatpush1.bf16.xpose.msra.mxu0 0
    %608 = vmatprep.subr.bf16.mxu0 0
    %609 = vmatpush1.bf16.xpose.msra.mxu0 0
    %610 = vmatprep.subr.bf16.mxu0 0
    %611 = vmatpush1.bf16.xpose.msra.mxu0 0
    %612 = vmatprep.mubr.bf16.mxu0 0
    %613 = vmatmul.mubr.bf16.gmra.mrb[0].mxu0 %v575
    %v614 = vpop.f32.mrb[0].mxu0
    %v615 = vadd.f32 0.0, %v614
    %v616 = vpop.f32.mrb[0].mxu0
    %v617 = vpop.f32.mrb[0].mxu0
    %v618 = vpop.f32.mrb[0].mxu0
    %619 = vdwg.mxu0
    %v620 = vsel %vm152, %v615, -inf
    %621 = vmax.xlane.f32.xlu0 %v620
    %v622 = vpop.xlane.xlu0 %621
    %v623 = vsub.f32 %v615, %v622
    %v624 = vmul.f32 %v623, 1.442695
    %v625 = vpow.pop %v624
    %v626 = vsel %vm152, %v625, 0.0
    %627 = vadd.xlane.f32.xlu0 %v626
    %v628 = vpop.xlane.xlu0 %627
    %v629 = vrcp.pop %v628
    %v630 = vmul.f32 %v625, %v629
    %s631 = scalar_lea.vmem [#allocation4], 32
    %632 = vst.msk [vmem:[%s631] sm:$0xff] %vm152, %v630
    %v633 = vpack.c.bf16 %v630, %v630
    %v634 = vrot.slane %v101, 4
    %v636 = vsel %vm152, %v633, 0
    %v639 = vsel %vm169, %v634, 0
    %641 = vmatprep.subr.bf16.mxu0 0
    %642 = vmatpush1.bf16.msra.mxu0 %v639
    %643 = vmatprep.subr.bf16.mxu0 0
    %644 = vmatpush1.bf16.msra.mxu0 0
    %645 = vmatprep.subr.bf16.mxu0 0
    %646 = vmatpush1.bf16.msra.mxu0 0
    %647 = vmatprep.subr.bf16.mxu0 0
    %648 = vmatpush1.bf16.msra.mxu0 0
    %649 = vmatprep.subr.bf16.mxu0 0
    %650 = vmatpush1.bf16.msra.mxu0 0
    %651 = vmatprep.subr.bf16.mxu0 0
    %652 = vmatpush1.bf16.msra.mxu0 0
    %653 = vmatprep.subr.bf16.mxu0 0
    %654 = vmatpush1.bf16.msra.mxu0 0
    %655 = vmatprep.subr.bf16.mxu0 0
    %656 = vmatpush1.bf16.msra.mxu0 0
    %657 = vmatprep.subr.bf16.mxu0 0
    %658 = vmatpush1.bf16.msra.mxu0 0
    %659 = vmatprep.subr.bf16.mxu0 0
    %660 = vmatpush1.bf16.msra.mxu0 0
    %661 = vmatprep.subr.bf16.mxu0 0
    %662 = vmatpush1.bf16.msra.mxu0 0
    %663 = vmatprep.subr.bf16.mxu0 0
    %664 = vmatpush1.bf16.msra.mxu0 0
    %665 = vmatprep.subr.bf16.mxu0 0
    %666 = vmatpush1.bf16.msra.mxu0 0
    %667 = vmatprep.subr.bf16.mxu0 0
    %668 = vmatpush1.bf16.msra.mxu0 0
    %669 = vmatprep.subr.bf16.mxu0 0
    %670 = vmatpush1.bf16.msra.mxu0 0
    %671 = vmatprep.subr.bf16.mxu0 0
    %672 = vmatpush1.bf16.msra.mxu0 0
    %673 = vmatprep.mubr.bf16.mxu0 0
    %674 = vmatmul.mubr.bf16.gmra.mrb[0].mxu0 %v636
    %v675 = vpop.f32.mrb[0].mxu0
    %v676 = vadd.f32 0.0, %v675
    %v677 = vpop.f32.mrb[0].mxu0
    %v678 = vpop.f32.mrb[0].mxu0
    %v679 = vpop.f32.mrb[0].mxu0
    %680 = vdwg.mxu0
    %v681 = vpack.c.bf16 %v676, %v676
    %682 = vrot.lane.b32.xlu0 %v571, 112
    %v683 = vpop.permute.xlu0 %682
    %684 = vrot.lane.b32.xlu0 %v571, 48
    %v685 = vpop.permute.xlu0 %684
    %v687 = vsel %vm105, %v683, 0
    %v690 = vsel %vm105, %v685, 0
    %692 = vmatprep.subr.bf16.mxu0 0
    %693 = vmatpush1.bf16.xpose.msra.mxu0 %v690
    %694 = vmatprep.subr.bf16.mxu0 0
    %695 = vmatpush1.bf16.xpose.msra.mxu0 0
    %696 = vmatprep.subr.bf16.mxu0 0
    %697 = vmatpush1.bf16.xpose.msra.mxu0 0
    %698 = vmatprep.subr.bf16.mxu0 0
    %699 = vmatpush1.bf16.xpose.msra.mxu0 0
    %700 = vmatprep.subr.bf16.mxu0 0
    %701 = vmatpush1.bf16.xpose.msra.mxu0 0
    %702 = vmatprep.subr.bf16.mxu0 0
    %703 = vmatpush1.bf16.xpose.msra.mxu0 0
    %704 = vmatprep.subr.bf16.mxu0 0
    %705 = vmatpush1.bf16.xpose.msra.mxu0 0
    %706 = vmatprep.subr.bf16.mxu0 0
    %707 = vmatpush1.bf16.xpose.msra.mxu0 0
    %708 = vmatprep.subr.bf16.mxu0 0
    %709 = vmatpush1.bf16.xpose.msra.mxu0 0
    %710 = vmatprep.subr.bf16.mxu0 0
    %711 = vmatpush1.bf16.xpose.msra.mxu0 0
    %712 = vmatprep.subr.bf16.mxu0 0
    %713 = vmatpush1.bf16.xpose.msra.mxu0 0
    %714 = vmatprep.subr.bf16.mxu0 0
    %715 = vmatpush1.bf16.xpose.msra.mxu0 0
    %716 = vmatprep.subr.bf16.mxu0 0
    %717 = vmatpush1.bf16.xpose.msra.mxu0 0
    %718 = vmatprep.subr.bf16.mxu0 0
    %719 = vmatpush1.bf16.xpose.msra.mxu0 0
    %720 = vmatprep.subr.bf16.mxu0 0
    %721 = vmatpush1.bf16.xpose.msra.mxu0 0
    %722 = vmatprep.subr.bf16.mxu0 0
    %723 = vmatpush1.bf16.xpose.msra.mxu0 0
    %724 = vmatprep.mubr.bf16.mxu0 0
    %725 = vmatmul.mubr.bf16.gmra.mrb[0].mxu0 %v687
    %v726 = vpop.f32.mrb[0].mxu0
    %v727 = vadd.f32 0.0, %v726
    %v728 = vpop.f32.mrb[0].mxu0
    %v729 = vpop.f32.mrb[0].mxu0
    %v730 = vpop.f32.mrb[0].mxu0
    %731 = vdwg.mxu0
    %v732 = vsel %vm152, %v727, -inf
    %733 = vmax.xlane.f32.xlu0 %v732
    %v734 = vpop.xlane.xlu0 %733
    %v735 = vsub.f32 %v727, %v734
    %v736 = vmul.f32 %v735, 1.442695
    %v737 = vpow.pop %v736
    %v738 = vsel %vm152, %v737, 0.0
    %739 = vadd.xlane.f32.xlu0 %v738
    %v740 = vpop.xlane.xlu0 %739
    %v741 = vrcp.pop %v740
    %v742 = vmul.f32 %v737, %v741
    %s743 = scalar_lea.vmem [#allocation4], 40
    %744 = vst.msk [vmem:[%s743] sm:$0xff] %vm152, %v742
    %v745 = vpack.c.bf16 %v742, %v742
    %746 = vrot.lane.b32.xlu0 %v634, 112
    %v747 = vpop.permute.xlu0 %746
    %v749 = vsel %vm152, %v745, 0
    %v752 = vsel %vm169, %v747, 0
    %754 = vmatprep.subr.bf16.mxu0 0
    %755 = vmatpush1.bf16.msra.mxu0 %v752
    %756 = vmatprep.subr.bf16.mxu0 0
    %757 = vmatpush1.bf16.msra.mxu0 0
    %758 = vmatprep.subr.bf16.mxu0 0
    %759 = vmatpush1.bf16.msra.mxu0 0
    %760 = vmatprep.subr.bf16.mxu0 0
    %761 = vmatpush1.bf16.msra.mxu0 0
    %762 = vmatprep.subr.bf16.mxu0 0
    %763 = vmatpush1.bf16.msra.mxu0 0
    %764 = vmatprep.subr.bf16.mxu0 0
    %765 = vmatpush1.bf16.msra.mxu0 0
    %766 = vmatprep.subr.bf16.mxu0 0
    %767 = vmatpush1.bf16.msra.mxu0 0
    %768 = vmatprep.subr.bf16.mxu0 0
    %769 = vmatpush1.bf16.msra.mxu0 0
    %770 = vmatprep.subr.bf16.mxu0 0
    %771 = vmatpush1.bf16.msra.mxu0 0
    %772 = vmatprep.subr.bf16.mxu0 0
    %773 = vmatpush1.bf16.msra.mxu0 0
    %774 = vmatprep.subr.bf16.mxu0 0
    %775 = vmatpush1.bf16.msra.mxu0 0
    %776 = vmatprep.subr.bf16.mxu0 0
    %777 = vmatpush1.bf16.msra.mxu0 0
    %778 = vmatprep.subr.bf16.mxu0 0
    %779 = vmatpush1.bf16.msra.mxu0 0
    %780 = vmatprep.subr.bf16.mxu0 0
    %781 = vmatpush1.bf16.msra.mxu0 0
    %782 = vmatprep.subr.bf16.mxu0 0
    %783 = vmatpush1.bf16.msra.mxu0 0
    %784 = vmatprep.subr.bf16.mxu0 0
    %785 = vmatpush1.bf16.msra.mxu0 0
    %786 = vmatprep.mubr.bf16.mxu0 0
    %787 = vmatmul.mubr.bf16.gmra.mrb[0].mxu0 %v749
    %v788 = vpop.f32.mrb[0].mxu0
    %v789 = vadd.f32 0.0, %v788
    %v790 = vpop.f32.mrb[0].mxu0
    %v791 = vpop.f32.mrb[0].mxu0
    %v792 = vpop.f32.mrb[0].mxu0
    %793 = vdwg.mxu0
    %v794 = vpack.c.bf16 %v789, %v789
    %795 = vrot.lane.b32.xlu0 %v571, 96
    %v796 = vpop.permute.xlu0 %795
    %797 = vrot.lane.b32.xlu0 %v571, 32
    %v798 = vpop.permute.xlu0 %797
    %v800 = vsel %vm105, %v796, 0
    %v803 = vsel %vm105, %v798, 0
    %805 = vmatprep.subr.bf16.mxu0 0
    %806 = vmatpush1.bf16.xpose.msra.mxu0 %v803
    %807 = vmatprep.subr.bf16.mxu0 0
    %808 = vmatpush1.bf16.xpose.msra.mxu0 0
    %809 = vmatprep.subr.bf16.mxu0 0
    %810 = vmatpush1.bf16.xpose.msra.mxu0 0
    %811 = vmatprep.subr.bf16.mxu0 0
    %812 = vmatpush1.bf16.xpose.msra.mxu0 0
    %813 = vmatprep.subr.bf16.mxu0 0
    %814 = vmatpush1.bf16.xpose.msra.mxu0 0
    %815 = vmatprep.subr.bf16.mxu0 0
    %816 = vmatpush1.bf16.xpose.msra.mxu0 0
    %817 = vmatprep.subr.bf16.mxu0 0
    %818 = vmatpush1.bf16.xpose.msra.mxu0 0
    %819 = vmatprep.subr.bf16.mxu0 0
    %820 = vmatpush1.bf16.xpose.msra.mxu0 0
    %821 = vmatprep.subr.bf16.mxu0 0
    %822 = vmatpush1.bf16.xpose.msra.mxu0 0
    %823 = vmatprep.subr.bf16.mxu0 0
    %824 = vmatpush1.bf16.xpose.msra.mxu0 0
    %825 = vmatprep.subr.bf16.mxu0 0
    %826 = vmatpush1.bf16.xpose.msra.mxu0 0
    %827 = vmatprep.subr.bf16.mxu0 0
    %828 = vmatpush1.bf16.xpose.msra.mxu0 0
    %829 = vmatprep.subr.bf16.mxu0 0
    %830 = vmatpush1.bf16.xpose.msra.mxu0 0
    %831 = vmatprep.subr.bf16.mxu0 0
    %832 = vmatpush1.bf16.xpose.msra.mxu0 0
    %833 = vmatprep.subr.bf16.mxu0 0
    %834 = vmatpush1.bf16.xpose.msra.mxu0 0
    %835 = vmatprep.subr.bf16.mxu0 0
    %836 = vmatpush1.bf16.xpose.msra.mxu0 0
    %837 = vmatprep.mubr.bf16.mxu0 0
    %838 = vmatmul.mubr.bf16.gmra.mrb[0].mxu0 %v800
    %v839 = vpop.f32.mrb[0].mxu0
    %v840 = vadd.f32 0.0, %v839
    %v841 = vpop.f32.mrb[0].mxu0
    %v842 = vpop.f32.mrb[0].mxu0
    %v843 = vpop.f32.mrb[0].mxu0
    %844 = vdwg.mxu0
    %v845 = vsel %vm152, %v840, -inf
    %846 = vmax.xlane.f32.xlu0 %v845
    %v847 = vpop.xlane.xlu0 %846
    %v848 = vsub.f32 %v840, %v847
    %v849 = vmul.f32 %v848, 1.442695
    %v850 = vpow.pop %v849
    %v851 = vsel %vm152, %v850, 0.0
    %852 = vadd.xlane.f32.xlu0 %v851
    %v853 = vpop.xlane.xlu0 %852
    %v854 = vrcp.pop %v853
    %v855 = vmul.f32 %v850, %v854
    %s856 = scalar_lea.vmem [#allocation4], 48
    %857 = vst.msk [vmem:[%s856] sm:$0xff] %vm152, %v855
    %v858 = vpack.c.bf16 %v855, %v855
    %859 = vrot.lane.b32.xlu0 %v634, 96
    %v860 = vpop.permute.xlu0 %859
    %v862 = vsel %vm152, %v858, 0
    %v865 = vsel %vm169, %v860, 0
    %867 = vmatprep.subr.bf16.mxu0 0
    %868 = vmatpush1.bf16.msra.mxu0 %v865
    %869 = vmatprep.subr.bf16.mxu0 0
    %870 = vmatpush1.bf16.msra.mxu0 0
    %871 = vmatprep.subr.bf16.mxu0 0
    %872 = vmatpush1.bf16.msra.mxu0 0
    %873 = vmatprep.subr.bf16.mxu0 0
    %874 = vmatpush1.bf16.msra.mxu0 0
    %875 = vmatprep.subr.bf16.mxu0 0
    %876 = vmatpush1.bf16.msra.mxu0 0
    %877 = vmatprep.subr.bf16.mxu0 0
    %878 = vmatpush1.bf16.msra.mxu0 0
    %879 = vmatprep.subr.bf16.mxu0 0
    %880 = vmatpush1.bf16.msra.mxu0 0
    %881 = vmatprep.subr.bf16.mxu0 0
    %882 = vmatpush1.bf16.msra.mxu0 0
    %883 = vmatprep.subr.bf16.mxu0 0
    %884 = vmatpush1.bf16.msra.mxu0 0
    %885 = vmatprep.subr.bf16.mxu0 0
    %886 = vmatpush1.bf16.msra.mxu0 0
    %887 = vmatprep.subr.bf16.mxu0 0
    %888 = vmatpush1.bf16.msra.mxu0 0
    %889 = vmatprep.subr.bf16.mxu0 0
    %890 = vmatpush1.bf16.msra.mxu0 0
    %891 = vmatprep.subr.bf16.mxu0 0
    %892 = vmatpush1.bf16.msra.mxu0 0
    %893 = vmatprep.subr.bf16.mxu0 0
    %894 = vmatpush1.bf16.msra.mxu0 0
    %895 = vmatprep.subr.bf16.mxu0 0
    %896 = vmatpush1.bf16.msra.mxu0 0
    %897 = vmatprep.subr.bf16.mxu0 0
    %898 = vmatpush1.bf16.msra.mxu0 0
    %899 = vmatprep.mubr.bf16.mxu0 0
    %900 = vmatmul.mubr.bf16.gmra.mrb[0].mxu0 %v862
    %v901 = vpop.f32.mrb[0].mxu0
    %v902 = vadd.f32 0.0, %v901
    %v903 = vpop.f32.mrb[0].mxu0
    %v904 = vpop.f32.mrb[0].mxu0
    %v905 = vpop.f32.mrb[0].mxu0
    %906 = vdwg.mxu0
    %v907 = vpack.c.bf16 %v902, %v902
    %908 = vrot.lane.b32.xlu0 %v571, 80
    %v909 = vpop.permute.xlu0 %908
    %910 = vrot.lane.b32.xlu0 %v571, 16
    %v911 = vpop.permute.xlu0 %910
    %v913 = vsel %vm105, %v909, 0
    %v916 = vsel %vm105, %v911, 0
    %918 = vmatprep.subr.bf16.mxu0 0
    %919 = vmatpush1.bf16.xpose.msra.mxu0 %v916
    %920 = vmatprep.subr.bf16.mxu0 0
    %921 = vmatpush1.bf16.xpose.msra.mxu0 0
    %922 = vmatprep.subr.bf16.mxu0 0
    %923 = vmatpush1.bf16.xpose.msra.mxu0 0
    %924 = vmatprep.subr.bf16.mxu0 0
    %925 = vmatpush1.bf16.xpose.msra.mxu0 0
    %926 = vmatprep.subr.bf16.mxu0 0
    %927 = vmatpush1.bf16.xpose.msra.mxu0 0
    %928 = vmatprep.subr.bf16.mxu0 0
    %929 = vmatpush1.bf16.xpose.msra.mxu0 0
    %930 = vmatprep.subr.bf16.mxu0 0
    %931 = vmatpush1.bf16.xpose.msra.mxu0 0
    %932 = vmatprep.subr.bf16.mxu0 0
    %933 = vmatpush1.bf16.xpose.msra.mxu0 0
    %934 = vmatprep.subr.bf16.mxu0 0
    %935 = vmatpush1.bf16.xpose.msra.mxu0 0
    %936 = vmatprep.subr.bf16.mxu0 0
    %937 = vmatpush1.bf16.xpose.msra.mxu0 0
    %938 = vmatprep.subr.bf16.mxu0 0
    %939 = vmatpush1.bf16.xpose.msra.mxu0 0
    %940 = vmatprep.subr.bf16.mxu0 0
    %941 = vmatpush1.bf16.xpose.msra.mxu0 0
    %942 = vmatprep.subr.bf16.mxu0 0
    %943 = vmatpush1.bf16.xpose.msra.mxu0 0
    %944 = vmatprep.subr.bf16.mxu0 0
    %945 = vmatpush1.bf16.xpose.msra.mxu0 0
    %946 = vmatprep.subr.bf16.mxu0 0
    %947 = vmatpush1.bf16.xpose.msra.mxu0 0
    %948 = vmatprep.subr.bf16.mxu0 0
    %949 = vmatpush1.bf16.xpose.msra.mxu0 0
    %950 = vmatprep.mubr.bf16.mxu0 0
    %951 = vmatmul.mubr.bf16.gmra.mrb[0].mxu0 %v913
    %v952 = vpop.f32.mrb[0].mxu0
    %v953 = vadd.f32 0.0, %v952
    %v954 = vpop.f32.mrb[0].mxu0
    %v955 = vpop.f32.mrb[0].mxu0
    %v956 = vpop.f32.mrb[0].mxu0
    %957 = vdwg.mxu0
    %v958 = vsel %vm152, %v953, -inf
    %959 = vmax.xlane.f32.xlu0 %v958
    %v960 = vpop.xlane.xlu0 %959
    %v961 = vsub.f32 %v953, %v960
    %v962 = vmul.f32 %v961, 1.442695
    %v963 = vpow.pop %v962
    %v964 = vsel %vm152, %v963, 0.0
    %965 = vadd.xlane.f32.xlu0 %v964
    %v966 = vpop.xlane.xlu0 %965
    %v967 = vrcp.pop %v966
    %v968 = vmul.f32 %v963, %v967
    %s969 = scalar_lea.vmem [#allocation4], 56
    %970 = vst.msk [vmem:[%s969] sm:$0xff] %vm152, %v968
    %v971 = vpack.c.bf16 %v968, %v968
    %972 = vrot.lane.b32.xlu0 %v634, 80
    %v973 = vpop.permute.xlu0 %972
    %v975 = vsel %vm152, %v971, 0
    %v978 = vsel %vm169, %v973, 0
    %980 = vmatprep.subr.bf16.mxu0 0
    %981 = vmatpush1.bf16.msra.mxu0 %v978
    %982 = vmatprep.subr.bf16.mxu0 0
    %983 = vmatpush1.bf16.msra.mxu0 0
    %984 = vmatprep.subr.bf16.mxu0 0
    %985 = vmatpush1.bf16.msra.mxu0 0
    %986 = vmatprep.subr.bf16.mxu0 0
    %987 = vmatpush1.bf16.msra.mxu0 0
    %988 = vmatprep.subr.bf16.mxu0 0
    %989 = vmatpush1.bf16.msra.mxu0 0
    %990 = vmatprep.subr.bf16.mxu0 0
    %991 = vmatpush1.bf16.msra.mxu0 0
    %992 = vmatprep.subr.bf16.mxu0 0
    %993 = vmatpush1.bf16.msra.mxu0 0
    %994 = vmatprep.subr.bf16.mxu0 0
    %995 = vmatpush1.bf16.msra.mxu0 0
    %996 = vmatprep.subr.bf16.mxu0 0
    %997 = vmatpush1.bf16.msra.mxu0 0
    %998 = vmatprep.subr.bf16.mxu0 0
    %999 = vmatpush1.bf16.msra.mxu0 0
    %1000 = vmatprep.subr.bf16.mxu0 0
    %1001 = vmatpush1.bf16.msra.mxu0 0
    %1002 = vmatprep.subr.bf16.mxu0 0
    %1003 = vmatpush1.bf16.msra.mxu0 0
    %1004 = vmatprep.subr.bf16.mxu0 0
    %1005 = vmatpush1.bf16.msra.mxu0 0
    %1006 = vmatprep.subr.bf16.mxu0 0
    %1007 = vmatpush1.bf16.msra.mxu0 0
    %1008 = vmatprep.subr.bf16.mxu0 0
    %1009 = vmatpush1.bf16.msra.mxu0 0
    %1010 = vmatprep.subr.bf16.mxu0 0
    %1011 = vmatpush1.bf16.msra.mxu0 0
    %1012 = vmatprep.mubr.bf16.mxu0 0
    %1013 = vmatmul.mubr.bf16.gmra.mrb[0].mxu0 %v975
    %v1014 = vpop.f32.mrb[0].mxu0
    %v1015 = vadd.f32 0.0, %v1014
    %v1016 = vpop.f32.mrb[0].mxu0
    %v1017 = vpop.f32.mrb[0].mxu0
    %v1018 = vpop.f32.mrb[0].mxu0
    %1019 = vdwg.mxu0
    %v1020 = vpack.c.bf16 %v1015, %v1015
    %1022 = vrot.lane.b32.xlu0 %v794, 16
    %v1023 = vpop.permute.xlu0 %1022
    %1025 = vrot.lane.b32.xlu0 %v907, 32
    %v1026 = vpop.permute.xlu0 %1025
    %1028 = vrot.lane.b32.xlu0 %v1020, 48
    %v1029 = vpop.permute.xlu0 %1028
    %v1032 = vsel %vm105, %v681, %v1023
    %v1034 = vsel %vm53, %v1032, %v1026
    %v1036 = vsel %vm568, %v1034, %v1029
    %v1038 = vrot.slane %v1036, 4
    %v1040 = vsel %vm169, %v570, %v1038
    %v1041 = vld [vmem:[%s2] sm:$0xf]
    %v1042 = vld [vmem:[%s2 + $0x4] sm:$0xf]
    %v1043 = vld [vmem:[%s2 + $0x8] sm:$0xf]
    %v1044 = vld [vmem:[%s2 + $0xc] sm:$0xf]
    %v1045 = vld [vmem:[%s2 + $0x10] sm:$0xf]
    %v1046 = vld [vmem:[%s2 + $0x14] sm:$0xf]
    %v1047 = vld [vmem:[%s2 + $0x18] sm:$0xf]
    %v1048 = vld [vmem:[%s2 + $0x1c] sm:$0xf]
    %v1049 = vld [vmem:[%s3] sm:$0x1]
    %v1051 = vlaneseq
    %v1052 = vshrl.u32 %v1051, 7
    %v1053 = vsub.s32 0, %v1052
    %v1054 = vrot.slane %v1049, %v1053
    %v1064 = vunpack.c.l.b16 %v1041
    %v1065 = vunpack.c.l.b16 %v1042
    %v1066 = vunpack.c.l.b16 %v1043
    %v1067 = vunpack.c.l.b16 %v1044
    %v1068 = vunpack.c.l.b16 %v1045
    %v1069 = vunpack.c.l.b16 %v1046
    %v1070 = vunpack.c.l.b16 %v1047
    %v1071 = vunpack.c.l.b16 %v1048
    %v1072 = vpack.c.b16 %v1065, %v1064
    %v1073 = vpack.c.b16 %v1067, %v1066
    %v1074 = vpack.c.b16 %v1069, %v1068
    %v1075 = vpack.c.b16 %v1071, %v1070
    %vm1080 = vcmask 523264
    %v1081 = vsel %vm1080, %v1040, 0
    %1083 = vmatprep.subr.bf16.mxu0 0
    %1084 = vmatpush1.bf16.msra.mxu0 %v1072
    %1085 = vmatprep.subr.bf16.mxu0 0
    %1086 = vmatpush1.bf16.msra.mxu0 %v1073
    %1087 = vmatprep.subr.bf16.mxu0 0
    %1088 = vmatpush1.bf16.msra.mxu0 %v1074
    %1089 = vmatprep.subr.bf16.mxu0 0
    %1090 = vmatpush1.bf16.msra.mxu0 %v1075
    %1091 = vmatprep.subr.bf16.mxu0 0
    %1092 = vmatpush1.bf16.msra.mxu0 0
    %1093 = vmatprep.subr.bf16.mxu0 0
    %1094 = vmatpush1.bf16.msra.mxu0 0
    %1095 = vmatprep.subr.bf16.mxu0 0
    %1096 = vmatpush1.bf16.msra.mxu0 0
    %1097 = vmatprep.subr.bf16.mxu0 0
    %1098 = vmatpush1.bf16.msra.mxu0 0
    %1099 = vmatprep.subr.bf16.mxu0 0
    %1100 = vmatpush1.bf16.msra.mxu0 0
    %1101 = vmatprep.subr.bf16.mxu0 0
    %1102 = vmatpush1.bf16.msra.mxu0 0
    %1103 = vmatprep.subr.bf16.mxu0 0
    %1104 = vmatpush1.bf16.msra.mxu0 0
    %1105 = vmatprep.subr.bf16.mxu0 0
    %1106 = vmatpush1.bf16.msra.mxu0 0
    %1107 = vmatprep.subr.bf16.mxu0 0
    %1108 = vmatpush1.bf16.msra.mxu0 0
    %1109 = vmatprep.subr.bf16.mxu0 0
    %1110 = vmatpush1.bf16.msra.mxu0 0
    %1111 = vmatprep.subr.bf16.mxu0 0
    %1112 = vmatpush1.bf16.msra.mxu0 0
    %1113 = vmatprep.subr.bf16.mxu0 0
    %1114 = vmatpush1.bf16.msra.mxu0 0
    %1115 = vmatprep.mubr.bf16.mxu0 0
    %1116 = vmatmul.mubr.bf16.gmra.mrb[0].mxu0 %v1081
    %v1117 = vpop.f32.mrb[0].mxu0
    %v1118 = vadd.f32 %v1054, %v1117
    %v1119 = vpop.f32.mrb[0].mxu0
    %v1120 = vpop.f32.mrb[0].mxu0
    %v1121 = vadd.f32 %v1054, %v1120
    %v1122 = vpop.f32.mrb[0].mxu0
    %1123 = vdwg.mxu0
    %1124 = vst.msk [vmem:[#allocation2] sm:$0xff] %vm53, %v1118
    %1125 = vst.msk [vmem:[#allocation2 + $0x8] sm:$0xff] %vm53, %v1121
    // Predicated region
    $region18: #{tpu_custom_call.1} parent=1 // pred_check
      _
    $region19: #{tpu_custom_call.1} parent=1 // pred_check_branch
      %1127 = sbr.rel (0) target = $region21
    $region20: #{tpu_custom_call.1} parent=1 // pred_region
      %s1129 = ssub.s32 256, 256
      %1130 = vsyncadd [#allocation3], %s1129
      %s1131 = sshll.u32 [#allocation2], 4
      %s1132 = int_to_ptr.vmem [resolvable:$true] %s1131
      %1137 = dma.vmem_to_hbm [thread:$0]  %s1132, 256, %s4, [#allocation3], 128, 128, 8
    $region21: #{tpu_custom_call.1} parent=1 // pred_fallthru
      _
    // Predicated region
    $region22: #{tpu_custom_call.1} parent=1 // pred_check
      _
    $region23: #{tpu_custom_call.1} parent=1 // pred_check_branch
      %1139 = sbr.rel (0) target = $region25
    $region24: #{tpu_custom_call.1} parent=1 // pred_region
      %s1141 = ssub.s32 1024, 1024
      %1142 = vsyncadd [#allocation5], %s1141
      %s1143 = sshll.u32 [#allocation4], 4
      %s1144 = int_to_ptr.vmem [resolvable:$true] %s1143
      %1149 = dma.vmem_to_hbm [thread:$0]  %s1144, 1024, %s5, [#allocation5], 128, 128, 8
    $region25: #{tpu_custom_call.1} parent=1 // pred_fallthru
      _
    // Predicated region
    $region26: #{tpu_custom_call.1} parent=1 // pred_check
      _
    $region27: #{tpu_custom_call.1} parent=1 // pred_check_branch
      %1151 = sbr.rel (0) target = $region29
    $region28: #{tpu_custom_call.1} parent=1 // pred_region
      %1152 = dma.done [#allocation3], 256
    $region29: #{tpu_custom_call.1} parent=1 // pred_fallthru
      _
    // Predicated region
    $region30: #{tpu_custom_call.1} parent=1 // pred_check
      _
    $region31: #{tpu_custom_call.1} parent=1 // pred_check_branch
      %1154 = sbr.rel (0) target = $region33
    $region32: #{tpu_custom_call.1} parent=1 // pred_region
      %1155 = dma.done [#allocation5], 1024
    $region33: #{tpu_custom_call.1} parent=1 // pred_fallthru
      _
    %1156 = vsyncpa [#allocation3], 1
    %1157 = vsyncpa [#allocation5], 1

</llo_original>
